<compile_context>
chip_gen: v7x
topology: tpu7x:2x2x1
jax: 0.10.0
libtpu: 0.0.40
codegen_flags: <defaults>
</compile_context>

<pallas_src>
import functools

import jax
import jax.numpy as jnp
from jax.experimental import pallas as pl
from jax.experimental.pallas import tpu as pltpu


def _round_up(x, m):
    return (x + m - 1) // m * m


def _cdiv(a, b):
    return (a + b - 1) // b


def _sigmoid(x):
    # One EUP op (tanh) instead of exp + divide.
    return 0.5 * jnp.tanh(0.5 * x) + 0.5


def _vmem_limit_bytes():
    # Size the scoped-VMEM limit from the actual chip instead of a fixed 32 MiB
    # (v5e/v6e: 128 MiB physical, v7x: 64 MiB).  Leave ~25% headroom.
    try:
        cap = int(pltpu.get_tpu_info().vmem_capacity_bytes)
    except Exception:
        cap = 64 * 1024 * 1024
    return max(32 * 1024 * 1024, min((cap * 3) // 4, 112 * 1024 * 1024))


def _pick_time_chunk(T, Bp, Hp):
    """Timesteps per grid step: enough rows (~512) for an M-efficient input
    projection matmul, but capped so the per-chunk scratch stays modest."""
    tc = max(1, 512 // Bp)
    per_t_bytes = Bp * (4 * Hp + Hp) * 4          # gx slab (f32) + hidden slab (f32)
    tc = max(1, min(tc, (8 * 1024 * 1024) // max(1, per_t_bytes)))
    return min(tc, T)


# ----------------------------------------------------------------------------
# Fused kernel: one grid step = Tc timesteps of every layer (+ FC at the end).
# ----------------------------------------------------------------------------
def _lstm_model_kernel(*refs, T, Tc, Bp, Hp, num_layers, num_chunks):
    # refs: [x_chunk, (w_ih, w_hh, b) * L, fc_w, fc_b] + [out] + scratch
    x_ref = refs[0]
    fc_w_ref = refs[1 + 3 * num_layers]
    fc_b_ref = refs[2 + 3 * num_layers]
    n_in = 3 + 3 * num_layers
    out_ref = refs[n_in]
    hs_scr = refs[n_in + 1]    # (Tc*Bp, Hp)   f32 inter-layer hidden slab (this chunk)
    gx_scr = refs[n_in + 2]    # (Tc*Bp, 4Hp)  f32 gate pre-activations (this chunk)
    h_state = refs[n_in + 3]   # (L, Bp, Hp)   f32 recurrent h, carried across chunks
    c_state = refs[n_in + 4]   # (L, Bp, Hp)   f32 recurrent c, carried across chunks

    chunk = pl.program_id(0)
    needs_mask = (num_chunks * Tc) != T   # static: padded timesteps in last chunk?

    @pl.when(chunk == 0)
    def _init():
        h_state[...] = jnp.zeros_like(h_state)
        c_state[...] = jnp.zeros_like(c_state)

    h_last = None
    for l in range(num_layers):
        w_ih_ref = refs[1 + 3 * l]    # (K, 4Hp)   K = D for l==0 else Hp
        w_hh_ref = refs[2 + 3 * l]    # (Hp, 4Hp)
        b_ref = refs[3 + 3 * l]       # (1, 4Hp)   f32

        # --- input projection for the whole chunk: one big MXU matmul -------
        src_ref = x_ref if l == 0 else hs_scr
        gx_scr[...] = (
            jnp.dot(src_ref[...].astype(w_ih_ref.dtype), w_ih_ref[...],
                    preferred_element_type=jnp.float32)
            + b_ref[...])

        write_seq = l < num_layers - 1   # last layer: only h feeds the FC

        # --- serial recurrence over this chunk -------------------------------
        # TODO(synk): hold W_hh MXU-resident across the T steps via
        # pltpu.matmul_push_rhs / matmul_acc_lhs / matmul_pop.
        def step(t, carry, w_hh_ref=w_hh_ref, write_seq=write_seq):
            h, c = carry
            row = pl.multiple_of(t * Bp, Bp)       # sublane-aligned row offset
            gates = gx_scr[pl.ds(row, Bp), :] + jnp.dot(
                h.astype(w_hh_ref.dtype), w_hh_ref[...],
                preferred_element_type=jnp.float32)
            i_g = _sigmoid(gates[:, 0 * Hp:1 * Hp])
            f_g = _sigmoid(gates[:, 1 * Hp:2 * Hp])
            g_g = jnp.tanh(gates[:, 2 * Hp:3 * Hp])
            o_g = _sigmoid(gates[:, 3 * Hp:4 * Hp])
            c_new = f_g * c + i_g * g_g
            h_new = o_g * jnp.tanh(c_new)
            if needs_mask:                         # freeze state on padded timesteps
                valid = (chunk * Tc + t) < T
                h_new = jnp.where(valid, h_new, h)
                c_new = jnp.where(valid, c_new, c)
            if write_seq:
                hs_scr[pl.ds(row, Bp), :] = h_new
            return (h_new, c_new)

        h0 = h_state[l, :, :]
        c0 = c_state[l, :, :]
        if Tc % 2 == 0:
            # 2x unrolled loop body -> LLO can overlap step t's gate math with
            # step t+1's gx load / matmul push.
            def step2(i, carry, step=step):
                return step(2 * i + 1, step(2 * i, carry))
            h, c = jax.lax.fori_loop(0, Tc // 2, step2, (h0, c0))
        else:
            h, c = jax.lax.fori_loop(0, Tc, step, (h0, c0))
        h_state[l, :, :] = h
        c_state[l, :, :] = c
        h_last = h

    # --- fused final Linear on the last hidden state (last chunk only) -------
    @pl.when(chunk == num_chunks - 1)
    def _fc():
        out_ref[...] = (
            jnp.dot(h_last.astype(fc_w_ref.dtype), fc_w_ref[...],
                    preferred_element_type=jnp.float32)
            + fc_b_ref[...]).astype(out_ref.dtype)


# ----------------------------------------------------------------------------
# Parameter preparation: transpose + lane/sublane zero padding + dtype cast.
# Gate g's H columns are placed at the Hp-aligned block [g*Hp, g*Hp + H).
# Zero-padded weight rows / bias lanes keep padded lanes of h, c exactly 0.
# ----------------------------------------------------------------------------
def _pad_gate_cols(w_t, H, Hp):
    K = w_t.shape[0]
    out = jnp.zeros((K, 4 * Hp), w_t.dtype)
    for g in range(4):
        out = out.at[:, g * Hp:g * Hp + H].set(w_t[:, g * H:(g + 1) * H])
    return out


def _prepare_kernel_params(params, H, Hp, Op, compute_dtype):
    D = params["layers"][0][0].shape[1]
    # Layer 0 contracts over D; only use bf16 there when D is lane-aligned.
    l0_dtype = compute_dtype if D % 128 == 0 else jnp.float32
    flat = []
    for l, (w_ih, w_hh, b_ih, b_hh) in enumerate(params["layers"]):
        w_ih_t = _pad_gate_cols(w_ih.T, H, Hp)                    # (d_in, 4Hp)
        if l == 0:
            w_ih_t = w_ih_t.astype(l0_dtype)
        else:
            w_ih_t = jnp.pad(w_ih_t, ((0, Hp - H), (0, 0))).astype(compute_dtype)
        w_hh_t = jnp.pad(_pad_gate_cols(w_hh.T, H, Hp),
                         ((0, Hp - H), (0, 0))).astype(compute_dtype)  # (Hp, 4Hp)
        b = _pad_gate_cols((b_ih + b_hh)[None, :], H, Hp).astype(jnp.float32)
        flat += [w_ih_t, w_hh_t, b]
    O = params["fc_w"].shape[0]
    fc_w_t = jnp.pad(params["fc_w"].T,
                     ((0, Hp - H), (0, Op - O))).astype(compute_dtype)  # (Hp, Op)
    fc_b = jnp.pad(params["fc_b"], (0, Op - O))[None, :].astype(jnp.float32)
    flat += [fc_w_t, fc_b]
    return flat, l0_dtype


# ----------------------------------------------------------------------------
# Full model forward (matches LSTMModel.forward, batch_first=True).
# ----------------------------------------------------------------------------
@functools.partial(jax.jit, static_argnames=("hidden_size", "compute_dtype"))
def lstm_model_forward(x_btd, params, hidden_size, compute_dtype=jnp.bfloat16):
    """x_btd: (B, T, D) -> (B, output_size)."""
    B, T, D = x_btd.shape
    H = hidden_size
    num_layers = len(params["layers"])
    output_size = params["fc_w"].shape[0]

    Bp = _round_up(B, 8)         # sublane multiple
    Hp = _round_up(H, 128)       # lane multiple per gate
    Op = _round_up(output_size, 128)   # lane-dense FC output

    Tc = _pick_time_chunk(T, Bp, Hp)
    num_chunks = _cdiv(T, Tc)
    Tp = num_chunks * Tc

    flat_weights, l0_dtype = _prepare_kernel_params(params, H, Hp, Op, compute_dtype)

    # (B,T,D) -> time-major, batch & time padded, flattened to a (Tp*Bp, D) slab
    # that the BlockSpec streams into VMEM one Tc-chunk at a time.
    x_tbd = jnp.transpose(x_btd, (1, 0, 2))
    x_pad = jnp.pad(x_tbd, ((0, Tp - T), (0, Bp - B), (0, 0)))
    x_flat = x_pad.reshape(Tp * Bp, D).astype(l0_dtype)

    kernel = functools.partial(_lstm_model_kernel, T=T, Tc=Tc, Bp=Bp, Hp=Hp,
                               num_layers=num_layers, num_chunks=num_chunks)

    def _resident_spec(arr):
        # Full-array block with a constant index map: fetched once, stays in VMEM.
        return pl.BlockSpec(arr.shape, lambda c: (0, 0))

    in_specs = [pl.BlockSpec((Tc * Bp, D), lambda c: (c, 0))]   # streamed x chunks
    in_specs += [_resident_spec(w) for w in flat_weights]

    out_pad = pl.pallas_call(
        kernel,
        out_shape=jax.ShapeDtypeStruct((Bp, Op), jnp.float32),
        grid_spec=pltpu.PrefetchScalarGridSpec(
            num_scalar_prefetch=0,
            grid=(num_chunks,),
            in_specs=in_specs,
            out_specs=pl.BlockSpec((Bp, Op), lambda c: (0, 0)),
            scratch_shapes=[
                pltpu.VMEM((Tc * Bp, Hp), jnp.float32),          # inter-layer hidden slab
                pltpu.VMEM((Tc * Bp, 4 * Hp), jnp.float32),      # gate pre-activations
                pltpu.VMEM((num_layers, Bp, Hp), jnp.float32),   # h carried across chunks
                pltpu.VMEM((num_layers, Bp, Hp), jnp.float32),   # c carried across chunks
            ]),
        compiler_params=pltpu.CompilerParams(
            dimension_semantics=("arbitrary",),
            vmem_limit_bytes=_vmem_limit_bytes()),
    )(x_flat, *flat_weights)
    return out_pad[:B, :output_size]


# ----------------------------------------------------------------------------
# Parameter init mimicking PyTorch shapes / init: U(-1/sqrt(H), 1/sqrt(H)).
# ----------------------------------------------------------------------------
def init_params(key, input_size, hidden_size, num_layers, output_size):
    H = hidden_size
    k = 1.0 / jnp.sqrt(jnp.float32(H))
    layers = []
    for layer in range(num_layers):
        d_in = input_size if layer == 0 else H
        key, k1, k2, k3, k4 = jax.random.split(key, 5)
        w_ih = jax.random.uniform(k1, (4 * H, d_in), jnp.float32, -k, k)
        w_hh = jax.random.uniform(k2, (4 * H, H), jnp.float32, -k, k)
        b_ih = jax.random.uniform(k3, (4 * H,), jnp.float32, -k, k)
        b_hh = jax.random.uniform(k4, (4 * H,), jnp.float32, -k, k)
        layers.append((w_ih, w_hh, b_ih, b_hh))
    key, k5, k6 = jax.random.split(key, 3)
    w_fc = jax.random.uniform(k5, (output_size, H), jnp.float32, -k, k)
    b_fc = jax.random.uniform(k6, (output_size,), jnp.float32, -k, k)
    return {"layers": layers, "fc_w": w_fc, "fc_b": b_fc}


# ----------------------------------------------------------------------------
# Pure-JAX reference (PyTorch LSTM semantics) for numerical sanity check.
# ----------------------------------------------------------------------------
def reference_forward(x_btd, params, hidden_size):
    H = hidden_size
    seq = jnp.transpose(x_btd, (1, 0, 2))  # (T, B, D)
    for (w_ih, w_hh, b_ih, b_hh) in params["layers"]:
        B = seq.shape[1]
        h = jnp.zeros((B, H), jnp.float32)
        c = jnp.zeros((B, H), jnp.float32)
        w_ih_t, w_hh_t = w_ih.T, w_hh.T
        b = (b_ih + b_hh)[None, :]

        def step(carry, x_t, w_ih_t=w_ih_t, w_hh_t=w_hh_t, b=b):
            h, c = carry
            g = x_t @ w_ih_t + h @ w_hh_t + b
            i = jax.nn.sigmoid(g[:, 0 * H:1 * H])
            f = jax.nn.sigmoid(g[:, 1 * H:2 * H])
            gg = jnp.tanh(g[:, 2 * H:3 * H])
            o = jax.nn.sigmoid(g[:, 3 * H:4 * H])
            c = f * c + i * gg
            h = o * jnp.tanh(c)
            return (h, c), h

        (_, _), hs = jax.lax.scan(step, (h, c), seq)
        seq = hs
    return seq[-1] @ params["fc_w"].T + params["fc_b"][None, :]


if __name__ == "__main__":
    # Small shapes consistent with the module.
    batch, seq_len = 2, 8
    input_size, hidden_size, num_layers, output_size = 4, 32, 2, 4

    key = jax.random.PRNGKey(0)
    key, kx = jax.random.split(key)
    x = jax.random.normal(kx, (batch, seq_len, input_size), jnp.float32)
    params = init_params(key, input_size, hidden_size, num_layers, output_size)

    ref = reference_forward(x, params, hidden_size)

    # f32 path: parity with the PyTorch-semantics reference.
    out_f32 = jax.block_until_ready(
        lstm_model_forward(x, params, hidden_size=hidden_size,
                           compute_dtype=jnp.float32))
    assert out_f32.shape == (batch, output_size)
    assert jnp.allclose(out_f32, ref, atol=1e-4, rtol=1e-4), "f32 mismatch vs reference"

    # Default bf16-weight path (f32 accumulation / f32 gate math): looser tolerance.
    out_bf16 = jax.block_until_ready(
        lstm_model_forward(x, params, hidden_size=hidden_size))
    assert out_bf16.shape == (batch, output_size)
    assert jnp.allclose(out_bf16, ref, atol=5e-2, rtol=5e-2), "bf16 mismatch vs reference"

    print("KERNEL_OK")
</pallas_src>

<mosaic_0001>
module attributes {stable_mosaic.version = 11 : i64} {
  func.func @_lstm_model_kernel(%arg0: i32, %arg1: memref<64x4xf32, #tpu.memory_space<vmem>>, %arg2: memref<4x512xf32, #tpu.memory_space<vmem>>, %arg3: memref<128x512xf32, #tpu.memory_space<vmem>>, %arg4: memref<1x512xf32, #tpu.memory_space<vmem>>, %arg5: memref<128x512xf32, #tpu.memory_space<vmem>>, %arg6: memref<128x512xf32, #tpu.memory_space<vmem>>, %arg7: memref<1x512xf32, #tpu.memory_space<vmem>>, %arg8: memref<128x128xf32, #tpu.memory_space<vmem>>, %arg9: memref<1x128xf32, #tpu.memory_space<vmem>>, %arg10: memref<8x128xf32, #tpu.memory_space<vmem>>, %arg11: memref<64x128xf32, #tpu.memory_space<vmem>>, %arg12: memref<64x512xf32, #tpu.memory_space<vmem>>, %arg13: memref<2x8x128xf32, #tpu.memory_space<vmem>>, %arg14: memref<2x8x128xf32, #tpu.memory_space<vmem>>) attributes {dimension_semantics = [#tpu.dimension_semantics<arbitrary>], iteration_bounds = array<i64: 1>, scalar_prefetch = 0 : i64, scratch_operands = 4 : i64, tpu.core_type = #tpu.core_type<tc>, window_params = [{transform_indices = @transform_0, window_bounds = array<i64: 64, 4>}, {pipeline_mode = #tpu.pipeline_mode<synchronous>, transform_indices = @transform_1, window_bounds = array<i64: 4, 512>}, {pipeline_mode = #tpu.pipeline_mode<synchronous>, transform_indices = @transform_2, window_bounds = array<i64: 128, 512>}, {pipeline_mode = #tpu.pipeline_mode<synchronous>, transform_indices = @transform_3, window_bounds = array<i64: 1, 512>}, {pipeline_mode = #tpu.pipeline_mode<synchronous>, transform_indices = @transform_4, window_bounds = array<i64: 128, 512>}, {pipeline_mode = #tpu.pipeline_mode<synchronous>, transform_indices = @transform_5, window_bounds = array<i64: 128, 512>}, {pipeline_mode = #tpu.pipeline_mode<synchronous>, transform_indices = @transform_6, window_bounds = array<i64: 1, 512>}, {pipeline_mode = #tpu.pipeline_mode<synchronous>, transform_indices = @transform_7, window_bounds = array<i64: 128, 128>}, {pipeline_mode = #tpu.pipeline_mode<synchronous>, transform_indices = @transform_8, window_bounds = array<i64: 1, 128>}, {pipeline_mode = #tpu.pipeline_mode<synchronous>, transform_indices = @transform_9, window_bounds = array<i64: 8, 128>}]} {
    %c0_i32 = arith.constant 0 : i32
    %0 = arith.cmpi eq, %arg0, %c0_i32 : i32
    %1 = arith.extui %0 : i1 to i32
    %c0_i32_0 = arith.constant 0 : i32
    %2 = arith.cmpi ne, %1, %c0_i32_0 : i32
    scf.if %2 {
      %cst_48 = arith.constant 0.000000e+00 : f32
      %44 = vector.broadcast %cst_48 : f32 to vector<2x8x128xf32>
      %c0_49 = arith.constant 0 : index
      %c0_50 = arith.constant 0 : index
      %c0_51 = arith.constant 0 : index
      %45 = vector.load %arg13[%c0_49, %c0_50, %c0_51] : memref<2x8x128xf32, #tpu.memory_space<vmem>>, vector<2x8x128xf32>
      tpu.vector_store %arg13[%c0_49, %c0_50, %c0_51], %44 {strides = array<i32>} : memref<2x8x128xf32, #tpu.memory_space<vmem>>, vector<2x8x128xf32>,
      %cst_52 = arith.constant 0.000000e+00 : f32
      %46 = vector.broadcast %cst_52 : f32 to vector<2x8x128xf32>
      %c0_53 = arith.constant 0 : index
      %c0_54 = arith.constant 0 : index
      %c0_55 = arith.constant 0 : index
      %47 = vector.load %arg14[%c0_53, %c0_54, %c0_55] : memref<2x8x128xf32, #tpu.memory_space<vmem>>, vector<2x8x128xf32>
      tpu.vector_store %arg14[%c0_53, %c0_54, %c0_55], %46 {strides = array<i32>} : memref<2x8x128xf32, #tpu.memory_space<vmem>>, vector<2x8x128xf32>,
    } else {
    }
    %c0 = arith.constant 0 : index
    %c0_1 = arith.constant 0 : index
    %3 = vector.load %arg1[%c0, %c0_1] : memref<64x4xf32, #tpu.memory_space<vmem>>, vector<64x4xf32>
    %c0_2 = arith.constant 0 : index
    %c0_3 = arith.constant 0 : index
    %4 = vector.load %arg2[%c0_2, %c0_3] : memref<4x512xf32, #tpu.memory_space<vmem>>, vector<4x512xf32>
    %cst = arith.constant dense<0.000000e+00> : vector<64x512xf32>
    %5 = tpu.matmul %3, %4, %cst {dimension_numbers = #tpu.dot_dimension_numbers<[1], [0], [0], [1], [0, 0, 1, 1], [], []>} : vector<64x4xf32>, vector<4x512xf32>, vector<64x512xf32> -> vector<64x512xf32>
    %c0_4 = arith.constant 0 : index
    %c0_5 = arith.constant 0 : index
    %6 = vector.load %arg4[%c0_4, %c0_5] : memref<1x512xf32, #tpu.memory_space<vmem>>, vector<1x512xf32>
    %7 = vector.broadcast %6 : vector<1x512xf32> to vector<64x512xf32>
    %8 = arith.addf %5, %7 : vector<64x512xf32>
    %c0_6 = arith.constant 0 : index
    %c0_7 = arith.constant 0 : index
    %9 = vector.load %arg12[%c0_6, %c0_7] : memref<64x512xf32, #tpu.memory_space<vmem>>, vector<64x512xf32>
    tpu.vector_store %arg12[%c0_6, %c0_7], %8 {strides = array<i32>} : memref<64x512xf32, #tpu.memory_space<vmem>>, vector<64x512xf32>,
    %c0_8 = arith.constant 0 : index
    %c0_9 = arith.constant 0 : index
    %c0_10 = arith.constant 0 : index
    %10 = vector.load %arg13[%c0_8, %c0_9, %c0_10] : memref<2x8x128xf32, #tpu.memory_space<vmem>>, vector<1x8x128xf32>
    %11 = vector.shape_cast %10 : vector<1x8x128xf32> to vector<8x128xf32>
    %c0_11 = arith.constant 0 : index
    %c0_12 = arith.constant 0 : index
    %c0_13 = arith.constant 0 : index
    %12 = vector.load %arg14[%c0_11, %c0_12, %c0_13] : memref<2x8x128xf32, #tpu.memory_space<vmem>>, vector<1x8x128xf32>
    %13 = vector.shape_cast %12 : vector<1x8x128xf32> to vector<8x128xf32>
    %c0_i32_14 = arith.constant 0 : i32
    %c4_i32 = arith.constant 4 : i32
    %14 = arith.addi %c0_i32_14, %c4_i32 : i32
    %c1_i32 = arith.constant 1 : i32
    %15:2 = scf.for %arg15 = %c0_i32_14 to %14 step %c1_i32 iter_args(%arg16 = %11, %arg17 = %13) -> (vector<8x128xf32>, vector<8x128xf32>)  : i32 {
      %c2_i32 = arith.constant 2 : i32
      %44 = arith.muli %c2_i32, %arg15 : i32
      %c1_i32_48 = arith.constant 1 : i32
      %45 = arith.addi %44, %c1_i32_48 : i32
      %c2_i32_49 = arith.constant 2 : i32
      %46 = arith.muli %c2_i32_49, %arg15 : i32
      %c8_i32 = arith.constant 8 : i32
      %47 = arith.muli %46, %c8_i32 : i32
      %48 = tpu.assume_multiple %47, 8 : i32
      %49 = arith.index_cast %48 : i32 to index
      %c0_50 = arith.constant 0 : index
      %50 = vector.load %arg12[%49, %c0_50] : memref<64x512xf32, #tpu.memory_space<vmem>>, vector<8x512xf32>
      %c0_51 = arith.constant 0 : index
      %c0_52 = arith.constant 0 : index
      %51 = vector.load %arg3[%c0_51, %c0_52] : memref<128x512xf32, #tpu.memory_space<vmem>>, vector<128x512xf32>
      %cst_53 = arith.constant dense<0.000000e+00> : vector<8x512xf32>
      %52 = tpu.matmul %arg16, %51, %cst_53 {dimension_numbers = #tpu.dot_dimension_numbers<[1], [0], [0], [1], [0, 0, 1, 1], [], []>} : vector<8x128xf32>, vector<128x512xf32>, vector<8x512xf32> -> vector<8x512xf32>
      %53 = arith.addf %50, %52 : vector<8x512xf32>
      %54 = vector.extract_strided_slice %53 {offsets = [0, 0], sizes = [8, 128], strides = [1, 1]} : vector<8x512xf32> to vector<8x128xf32>
      %cst_54 = arith.constant 5.000000e-01 : f32
      %55 = vector.broadcast %cst_54 : f32 to vector<8x128xf32>
      %56 = arith.mulf %55, %54 : vector<8x128xf32>
      %57 = math.tanh %56 : vector<8x128xf32>
      %cst_55 = arith.constant 5.000000e-01 : f32
      %58 = vector.broadcast %cst_55 : f32 to vector<8x128xf32>
      %59 = arith.mulf %58, %57 : vector<8x128xf32>
      %cst_56 = arith.constant 5.000000e-01 : f32
      %60 = vector.broadcast %cst_56 : f32 to vector<8x128xf32>
      %61 = arith.addf %59, %60 : vector<8x128xf32>
      %62 = vector.extract_strided_slice %53 {offsets = [0, 128], sizes = [8, 128], strides = [1, 1]} : vector<8x512xf32> to vector<8x128xf32>
      %cst_57 = arith.constant 5.000000e-01 : f32
      %63 = vector.broadcast %cst_57 : f32 to vector<8x128xf32>
      %64 = arith.mulf %63, %62 : vector<8x128xf32>
      %65 = math.tanh %64 : vector<8x128xf32>
      %cst_58 = arith.constant 5.000000e-01 : f32
      %66 = vector.broadcast %cst_58 : f32 to vector<8x128xf32>
      %67 = arith.mulf %66, %65 : vector<8x128xf32>
      %cst_59 = arith.constant 5.000000e-01 : f32
      %68 = vector.broadcast %cst_59 : f32 to vector<8x128xf32>
      %69 = arith.addf %67, %68 : vector<8x128xf32>
      %70 = vector.extract_strided_slice %53 {offsets = [0, 256], sizes = [8, 128], strides = [1, 1]} : vector<8x512xf32> to vector<8x128xf32>
      %71 = math.tanh %70 : vector<8x128xf32>
      %72 = vector.extract_strided_slice %53 {offsets = [0, 384], sizes = [8, 128], strides = [1, 1]} : vector<8x512xf32> to vector<8x128xf32>
      %cst_60 = arith.constant 5.000000e-01 : f32
      %73 = vector.broadcast %cst_60 : f32 to vector<8x128xf32>
      %74 = arith.mulf %73, %72 : vector<8x128xf32>
      %75 = math.tanh %74 : vector<8x128xf32>
      %cst_61 = arith.constant 5.000000e-01 : f32
      %76 = vector.broadcast %cst_61 : f32 to vector<8x128xf32>
      %77 = arith.mulf %76, %75 : vector<8x128xf32>
      %cst_62 = arith.constant 5.000000e-01 : f32
      %78 = vector.broadcast %cst_62 : f32 to vector<8x128xf32>
      %79 = arith.addf %77, %78 : vector<8x128xf32>
      %80 = arith.mulf %69, %arg17 : vector<8x128xf32>
      %81 = arith.mulf %61, %71 : vector<8x128xf32>
      %82 = arith.addf %80, %81 : vector<8x128xf32>
      %83 = math.tanh %82 : vector<8x128xf32>
      %84 = arith.mulf %79, %83 : vector<8x128xf32>
      %85 = arith.index_cast %48 : i32 to index
      %c0_63 = arith.constant 0 : index
      %86 = vector.load %arg11[%85, %c0_63] : memref<64x128xf32, #tpu.memory_space<vmem>>, vector<8x128xf32>
      tpu.vector_store %arg11[%85, %c0_63], %84 {strides = array<i32>} : memref<64x128xf32, #tpu.memory_space<vmem>>, vector<8x128xf32>,
      %c8_i32_64 = arith.constant 8 : i32
      %87 = arith.muli %45, %c8_i32_64 : i32
      %88 = tpu.assume_multiple %87, 8 : i32
      %89 = arith.index_cast %88 : i32 to index
      %c0_65 = arith.constant 0 : index
      %90 = vector.load %arg12[%89, %c0_65] : memref<64x512xf32, #tpu.memory_space<vmem>>, vector<8x512xf32>
      %c0_66 = arith.constant 0 : index
      %c0_67 = arith.constant 0 : index
      %91 = vector.load %arg3[%c0_66, %c0_67] : memref<128x512xf32, #tpu.memory_space<vmem>>, vector<128x512xf32>
      %cst_68 = arith.constant dense<0.000000e+00> : vector<8x512xf32>
      %92 = tpu.matmul %84, %91, %cst_68 {dimension_numbers = #tpu.dot_dimension_numbers<[1], [0], [0], [1], [0, 0, 1, 1], [], []>} : vector<8x128xf32>, vector<128x512xf32>, vector<8x512xf32> -> vector<8x512xf32>
      %93 = arith.addf %90, %92 : vector<8x512xf32>
      %94 = vector.extract_strided_slice %93 {offsets = [0, 0], sizes = [8, 128], strides = [1, 1]} : vector<8x512xf32> to vector<8x128xf32>
      %cst_69 = arith.constant 5.000000e-01 : f32
      %95 = vector.broadcast %cst_69 : f32 to vector<8x128xf32>
      %96 = arith.mulf %95, %94 : vector<8x128xf32>
      %97 = math.tanh %96 : vector<8x128xf32>
      %cst_70 = arith.constant 5.000000e-01 : f32
      %98 = vector.broadcast %cst_70 : f32 to vector<8x128xf32>
      %99 = arith.mulf %98, %97 : vector<8x128xf32>
      %cst_71 = arith.constant 5.000000e-01 : f32
      %100 = vector.broadcast %cst_71 : f32 to vector<8x128xf32>
      %101 = arith.addf %99, %100 : vector<8x128xf32>
      %102 = vector.extract_strided_slice %93 {offsets = [0, 128], sizes = [8, 128], strides = [1, 1]} : vector<8x512xf32> to vector<8x128xf32>
      %cst_72 = arith.constant 5.000000e-01 : f32
      %103 = vector.broadcast %cst_72 : f32 to vector<8x128xf32>
      %104 = arith.mulf %103, %102 : vector<8x128xf32>
      %105 = math.tanh %104 : vector<8x128xf32>
      %cst_73 = arith.constant 5.000000e-01 : f32
      %106 = vector.broadcast %cst_73 : f32 to vector<8x128xf32>
      %107 = arith.mulf %106, %105 : vector<8x128xf32>
      %cst_74 = arith.constant 5.000000e-01 : f32
      %108 = vector.broadcast %cst_74 : f32 to vector<8x128xf32>
      %109 = arith.addf %107, %108 : vector<8x128xf32>
      %110 = vector.extract_strided_slice %93 {offsets = [0, 256], sizes = [8, 128], strides = [1, 1]} : vector<8x512xf32> to vector<8x128xf32>
      %111 = math.tanh %110 : vector<8x128xf32>
      %112 = vector.extract_strided_slice %93 {offsets = [0, 384], sizes = [8, 128], strides = [1, 1]} : vector<8x512xf32> to vector<8x128xf32>
      %cst_75 = arith.constant 5.000000e-01 : f32
      %113 = vector.broadcast %cst_75 : f32 to vector<8x128xf32>
      %114 = arith.mulf %113, %112 : vector<8x128xf32>
      %115 = math.tanh %114 : vector<8x128xf32>
      %cst_76 = arith.constant 5.000000e-01 : f32
      %116 = vector.broadcast %cst_76 : f32 to vector<8x128xf32>
      %117 = arith.mulf %116, %115 : vector<8x128xf32>
      %cst_77 = arith.constant 5.000000e-01 : f32
      %118 = vector.broadcast %cst_77 : f32 to vector<8x128xf32>
      %119 = arith.addf %117, %118 : vector<8x128xf32>
      %120 = arith.mulf %109, %82 : vector<8x128xf32>
      %121 = arith.mulf %101, %111 : vector<8x128xf32>
      %122 = arith.addf %120, %121 : vector<8x128xf32>
      %123 = math.tanh %122 : vector<8x128xf32>
      %124 = arith.mulf %119, %123 : vector<8x128xf32>
      %125 = arith.index_cast %88 : i32 to index
      %c0_78 = arith.constant 0 : index
      %126 = vector.load %arg11[%125, %c0_78] : memref<64x128xf32, #tpu.memory_space<vmem>>, vector<8x128xf32>
      tpu.vector_store %arg11[%125, %c0_78], %124 {strides = array<i32>} : memref<64x128xf32, #tpu.memory_space<vmem>>, vector<8x128xf32>,
      scf.yield %124, %122 : vector<8x128xf32>, vector<8x128xf32>
    }
    %c4_i32_15 = arith.constant 4 : i32
    %c0_16 = arith.constant 0 : index
    %c0_17 = arith.constant 0 : index
    %c0_18 = arith.constant 0 : index
    %16 = vector.load %arg13[%c0_16, %c0_17, %c0_18] : memref<2x8x128xf32, #tpu.memory_space<vmem>>, vector<1x8x128xf32>
    %17 = vector.shape_cast %16 : vector<1x8x128xf32> to vector<8x128xf32>
    %18 = vector.shape_cast %15#0 : vector<8x128xf32> to vector<1x8x128xf32>
    tpu.vector_store %arg13[%c0_16, %c0_17, %c0_18], %18 {strides = array<i32>} : memref<2x8x128xf32, #tpu.memory_space<vmem>>, vector<1x8x128xf32>,
    %c0_19 = arith.constant 0 : index
    %c0_20 = arith.constant 0 : index
    %c0_21 = arith.constant 0 : index
    %19 = vector.load %arg14[%c0_19, %c0_20, %c0_21] : memref<2x8x128xf32, #tpu.memory_space<vmem>>, vector<1x8x128xf32>
    %20 = vector.shape_cast %19 : vector<1x8x128xf32> to vector<8x128xf32>
    %21 = vector.shape_cast %15#1 : vector<8x128xf32> to vector<1x8x128xf32>
    tpu.vector_store %arg14[%c0_19, %c0_20, %c0_21], %21 {strides = array<i32>} : memref<2x8x128xf32, #tpu.memory_space<vmem>>, vector<1x8x128xf32>,
    %c0_22 = arith.constant 0 : index
    %c0_23 = arith.constant 0 : index
    %22 = vector.load %arg11[%c0_22, %c0_23] : memref<64x128xf32, #tpu.memory_space<vmem>>, vector<64x128xf32>
    %c0_24 = arith.constant 0 : index
    %c0_25 = arith.constant 0 : index
    %23 = vector.load %arg5[%c0_24, %c0_25] : memref<128x512xf32, #tpu.memory_space<vmem>>, vector<128x512xf32>
    %cst_26 = arith.constant dense<0.000000e+00> : vector<64x512xf32>
    %24 = tpu.matmul %22, %23, %cst_26 {dimension_numbers = #tpu.dot_dimension_numbers<[1], [0], [0], [1], [0, 0, 1, 1], [], []>} : vector<64x128xf32>, vector<128x512xf32>, vector<64x512xf32> -> vector<64x512xf32>
    %c0_27 = arith.constant 0 : index
    %c0_28 = arith.constant 0 : index
    %25 = vector.load %arg7[%c0_27, %c0_28] : memref<1x512xf32, #tpu.memory_space<vmem>>, vector<1x512xf32>
    %26 = vector.broadcast %25 : vector<1x512xf32> to vector<64x512xf32>
    %27 = arith.addf %24, %26 : vector<64x512xf32>
    %c0_29 = arith.constant 0 : index
    %c0_30 = arith.constant 0 : index
    %28 = vector.load %arg12[%c0_29, %c0_30] : memref<64x512xf32, #tpu.memory_space<vmem>>, vector<64x512xf32>
    tpu.vector_store %arg12[%c0_29, %c0_30], %27 {strides = array<i32>} : memref<64x512xf32, #tpu.memory_space<vmem>>, vector<64x512xf32>,
    %c1 = arith.constant 1 : index
    %c0_31 = arith.constant 0 : index
    %c0_32 = arith.constant 0 : index
    %29 = vector.load %arg13[%c1, %c0_31, %c0_32] : memref<2x8x128xf32, #tpu.memory_space<vmem>>, vector<1x8x128xf32>
    %30 = vector.shape_cast %29 : vector<1x8x128xf32> to vector<8x128xf32>
    %c1_33 = arith.constant 1 : index
    %c0_34 = arith.constant 0 : index
    %c0_35 = arith.constant 0 : index
    %31 = vector.load %arg14[%c1_33, %c0_34, %c0_35] : memref<2x8x128xf32, #tpu.memory_space<vmem>>, vector<1x8x128xf32>
    %32 = vector.shape_cast %31 : vector<1x8x128xf32> to vector<8x128xf32>
    %c0_i32_36 = arith.constant 0 : i32
    %c4_i32_37 = arith.constant 4 : i32
    %33 = arith.addi %c0_i32_36, %c4_i32_37 : i32
    %c1_i32_38 = arith.constant 1 : i32
    %34:2 = scf.for %arg15 = %c0_i32_36 to %33 step %c1_i32_38 iter_args(%arg16 = %30, %arg17 = %32) -> (vector<8x128xf32>, vector<8x128xf32>)  : i32 {
      %c2_i32 = arith.constant 2 : i32
      %44 = arith.muli %c2_i32, %arg15 : i32
      %c1_i32_48 = arith.constant 1 : i32
      %45 = arith.addi %44, %c1_i32_48 : i32
      %c2_i32_49 = arith.constant 2 : i32
      %46 = arith.muli %c2_i32_49, %arg15 : i32
      %c8_i32 = arith.constant 8 : i32
      %47 = arith.muli %46, %c8_i32 : i32
      %48 = tpu.assume_multiple %47, 8 : i32
      %49 = arith.index_cast %48 : i32 to index
      %c0_50 = arith.constant 0 : index
      %50 = vector.load %arg12[%49, %c0_50] : memref<64x512xf32, #tpu.memory_space<vmem>>, vector<8x512xf32>
      %c0_51 = arith.constant 0 : index
      %c0_52 = arith.constant 0 : index
      %51 = vector.load %arg6[%c0_51, %c0_52] : memref<128x512xf32, #tpu.memory_space<vmem>>, vector<128x512xf32>
      %cst_53 = arith.constant dense<0.000000e+00> : vector<8x512xf32>
      %52 = tpu.matmul %arg16, %51, %cst_53 {dimension_numbers = #tpu.dot_dimension_numbers<[1], [0], [0], [1], [0, 0, 1, 1], [], []>} : vector<8x128xf32>, vector<128x512xf32>, vector<8x512xf32> -> vector<8x512xf32>
      %53 = arith.addf %50, %52 : vector<8x512xf32>
      %54 = vector.extract_strided_slice %53 {offsets = [0, 0], sizes = [8, 128], strides = [1, 1]} : vector<8x512xf32> to vector<8x128xf32>
      %cst_54 = arith.constant 5.000000e-01 : f32
      %55 = vector.broadcast %cst_54 : f32 to vector<8x128xf32>
      %56 = arith.mulf %55, %54 : vector<8x128xf32>
      %57 = math.tanh %56 : vector<8x128xf32>
      %cst_55 = arith.constant 5.000000e-01 : f32
      %58 = vector.broadcast %cst_55 : f32 to vector<8x128xf32>
      %59 = arith.mulf %58, %57 : vector<8x128xf32>
      %cst_56 = arith.constant 5.000000e-01 : f32
      %60 = vector.broadcast %cst_56 : f32 to vector<8x128xf32>
      %61 = arith.addf %59, %60 : vector<8x128xf32>
      %62 = vector.extract_strided_slice %53 {offsets = [0, 128], sizes = [8, 128], strides = [1, 1]} : vector<8x512xf32> to vector<8x128xf32>
      %cst_57 = arith.constant 5.000000e-01 : f32
      %63 = vector.broadcast %cst_57 : f32 to vector<8x128xf32>
      %64 = arith.mulf %63, %62 : vector<8x128xf32>
      %65 = math.tanh %64 : vector<8x128xf32>
      %cst_58 = arith.constant 5.000000e-01 : f32
      %66 = vector.broadcast %cst_58 : f32 to vector<8x128xf32>
      %67 = arith.mulf %66, %65 : vector<8x128xf32>
      %cst_59 = arith.constant 5.000000e-01 : f32
      %68 = vector.broadcast %cst_59 : f32 to vector<8x128xf32>
      %69 = arith.addf %67, %68 : vector<8x128xf32>
      %70 = vector.extract_strided_slice %53 {offsets = [0, 256], sizes = [8, 128], strides = [1, 1]} : vector<8x512xf32> to vector<8x128xf32>
      %71 = math.tanh %70 : vector<8x128xf32>
      %72 = vector.extract_strided_slice %53 {offsets = [0, 384], sizes = [8, 128], strides = [1, 1]} : vector<8x512xf32> to vector<8x128xf32>
      %cst_60 = arith.constant 5.000000e-01 : f32
      %73 = vector.broadcast %cst_60 : f32 to vector<8x128xf32>
      %74 = arith.mulf %73, %72 : vector<8x128xf32>
      %75 = math.tanh %74 : vector<8x128xf32>
      %cst_61 = arith.constant 5.000000e-01 : f32
      %76 = vector.broadcast %cst_61 : f32 to vector<8x128xf32>
      %77 = arith.mulf %76, %75 : vector<8x128xf32>
      %cst_62 = arith.constant 5.000000e-01 : f32
      %78 = vector.broadcast %cst_62 : f32 to vector<8x128xf32>
      %79 = arith.addf %77, %78 : vector<8x128xf32>
      %80 = arith.mulf %69, %arg17 : vector<8x128xf32>
      %81 = arith.mulf %61, %71 : vector<8x128xf32>
      %82 = arith.addf %80, %81 : vector<8x128xf32>
      %83 = math.tanh %82 : vector<8x128xf32>
      %84 = arith.mulf %79, %83 : vector<8x128xf32>
      %c8_i32_63 = arith.constant 8 : i32
      %85 = arith.muli %45, %c8_i32_63 : i32
      %86 = tpu.assume_multiple %85, 8 : i32
      %87 = arith.index_cast %86 : i32 to index
      %c0_64 = arith.constant 0 : index
      %88 = vector.load %arg12[%87, %c0_64] : memref<64x512xf32, #tpu.memory_space<vmem>>, vector<8x512xf32>
      %c0_65 = arith.constant 0 : index
      %c0_66 = arith.constant 0 : index
      %89 = vector.load %arg6[%c0_65, %c0_66] : memref<128x512xf32, #tpu.memory_space<vmem>>, vector<128x512xf32>
      %cst_67 = arith.constant dense<0.000000e+00> : vector<8x512xf32>
      %90 = tpu.matmul %84, %89, %cst_67 {dimension_numbers = #tpu.dot_dimension_numbers<[1], [0], [0], [1], [0, 0, 1, 1], [], []>} : vector<8x128xf32>, vector<128x512xf32>, vector<8x512xf32> -> vector<8x512xf32>
      %91 = arith.addf %88, %90 : vector<8x512xf32>
      %92 = vector.extract_strided_slice %91 {offsets = [0, 0], sizes = [8, 128], strides = [1, 1]} : vector<8x512xf32> to vector<8x128xf32>
      %cst_68 = arith.constant 5.000000e-01 : f32
      %93 = vector.broadcast %cst_68 : f32 to vector<8x128xf32>
      %94 = arith.mulf %93, %92 : vector<8x128xf32>
      %95 = math.tanh %94 : vector<8x128xf32>
      %cst_69 = arith.constant 5.000000e-01 : f32
      %96 = vector.broadcast %cst_69 : f32 to vector<8x128xf32>
      %97 = arith.mulf %96, %95 : vector<8x128xf32>
      %cst_70 = arith.constant 5.000000e-01 : f32
      %98 = vector.broadcast %cst_70 : f32 to vector<8x128xf32>
      %99 = arith.addf %97, %98 : vector<8x128xf32>
      %100 = vector.extract_strided_slice %91 {offsets = [0, 128], sizes = [8, 128], strides = [1, 1]} : vector<8x512xf32> to vector<8x128xf32>
      %cst_71 = arith.constant 5.000000e-01 : f32
      %101 = vector.broadcast %cst_71 : f32 to vector<8x128xf32>
      %102 = arith.mulf %101, %100 : vector<8x128xf32>
      %103 = math.tanh %102 : vector<8x128xf32>
      %cst_72 = arith.constant 5.000000e-01 : f32
      %104 = vector.broadcast %cst_72 : f32 to vector<8x128xf32>
      %105 = arith.mulf %104, %103 : vector<8x128xf32>
      %cst_73 = arith.constant 5.000000e-01 : f32
      %106 = vector.broadcast %cst_73 : f32 to vector<8x128xf32>
      %107 = arith.addf %105, %106 : vector<8x128xf32>
      %108 = vector.extract_strided_slice %91 {offsets = [0, 256], sizes = [8, 128], strides = [1, 1]} : vector<8x512xf32> to vector<8x128xf32>
      %109 = math.tanh %108 : vector<8x128xf32>
      %110 = vector.extract_strided_slice %91 {offsets = [0, 384], sizes = [8, 128], strides = [1, 1]} : vector<8x512xf32> to vector<8x128xf32>
      %cst_74 = arith.constant 5.000000e-01 : f32
      %111 = vector.broadcast %cst_74 : f32 to vector<8x128xf32>
      %112 = arith.mulf %111, %110 : vector<8x128xf32>
      %113 = math.tanh %112 : vector<8x128xf32>
      %cst_75 = arith.constant 5.000000e-01 : f32
      %114 = vector.broadcast %cst_75 : f32 to vector<8x128xf32>
      %115 = arith.mulf %114, %113 : vector<8x128xf32>
      %cst_76 = arith.constant 5.000000e-01 : f32
      %116 = vector.broadcast %cst_76 : f32 to vector<8x128xf32>
      %117 = arith.addf %115, %116 : vector<8x128xf32>
      %118 = arith.mulf %107, %82 : vector<8x128xf32>
      %119 = arith.mulf %99, %109 : vector<8x128xf32>
      %120 = arith.addf %118, %119 : vector<8x128xf32>
      %121 = math.tanh %120 : vector<8x128xf32>
      %122 = arith.mulf %117, %121 : vector<8x128xf32>
      scf.yield %122, %120 : vector<8x128xf32>, vector<8x128xf32>
    }
    %c4_i32_39 = arith.constant 4 : i32
    %c1_40 = arith.constant 1 : index
    %c0_41 = arith.constant 0 : index
    %c0_42 = arith.constant 0 : index
    %35 = vector.load %arg13[%c1_40, %c0_41, %c0_42] : memref<2x8x128xf32, #tpu.memory_space<vmem>>, vector<1x8x128xf32>
    %36 = vector.shape_cast %35 : vector<1x8x128xf32> to vector<8x128xf32>
    %37 = vector.shape_cast %34#0 : vector<8x128xf32> to vector<1x8x128xf32>
    tpu.vector_store %arg13[%c1_40, %c0_41, %c0_42], %37 {strides = array<i32>} : memref<2x8x128xf32, #tpu.memory_space<vmem>>, vector<1x8x128xf32>,
    %c1_43 = arith.constant 1 : index
    %c0_44 = arith.constant 0 : index
    %c0_45 = arith.constant 0 : index
    %38 = vector.load %arg14[%c1_43, %c0_44, %c0_45] : memref<2x8x128xf32, #tpu.memory_space<vmem>>, vector<1x8x128xf32>
    %39 = vector.shape_cast %38 : vector<1x8x128xf32> to vector<8x128xf32>
    %40 = vector.shape_cast %34#1 : vector<8x128xf32> to vector<1x8x128xf32>
    tpu.vector_store %arg14[%c1_43, %c0_44, %c0_45], %40 {strides = array<i32>} : memref<2x8x128xf32, #tpu.memory_space<vmem>>, vector<1x8x128xf32>,
    %c0_i32_46 = arith.constant 0 : i32
    %41 = arith.cmpi eq, %arg0, %c0_i32_46 : i32
    %42 = arith.extui %41 : i1 to i32
    %c0_i32_47 = arith.constant 0 : i32
    %43 = arith.cmpi ne, %42, %c0_i32_47 : i32
    scf.if %43 {
      %c0_48 = arith.constant 0 : index
      %c0_49 = arith.constant 0 : index
      %44 = vector.load %arg8[%c0_48, %c0_49] : memref<128x128xf32, #tpu.memory_space<vmem>>, vector<128x128xf32>
      %cst_50 = arith.constant dense<0.000000e+00> : vector<8x128xf32>
      %45 = tpu.matmul %34#0, %44, %cst_50 {dimension_numbers = #tpu.dot_dimension_numbers<[1], [0], [0], [1], [0, 0, 1, 1], [], []>} : vector<8x128xf32>, vector<128x128xf32>, vector<8x128xf32> -> vector<8x128xf32>
      %c0_51 = arith.constant 0 : index
      %c0_52 = arith.constant 0 : index
      %46 = vector.load %arg9[%c0_51, %c0_52] : memref<1x128xf32, #tpu.memory_space<vmem>>, vector<1x128xf32>
      %47 = vector.broadcast %46 : vector<1x128xf32> to vector<8x128xf32>
      %48 = arith.addf %45, %47 : vector<8x128xf32>
      %c0_53 = arith.constant 0 : index
      %c0_54 = arith.constant 0 : index
      %49 = vector.load %arg10[%c0_53, %c0_54] : memref<8x128xf32, #tpu.memory_space<vmem>>, vector<8x128xf32>
      tpu.vector_store %arg10[%c0_53, %c0_54], %48 {strides = array<i32>} : memref<8x128xf32, #tpu.memory_space<vmem>>, vector<8x128xf32>,
    } else {
    }
    return
  }
  func.func @transform_0(%arg0: i32) -> (i32, i32) {
    %c0_i32 = arith.constant 0 : i32
    %c0_i32_0 = arith.constant 0 : i32
    return %arg0, %c0_i32 : i32, i32
  }
  func.func @transform_1(%arg0: i32) -> (i32, i32) {
    %c0_i32 = arith.constant 0 : i32
    %c0_i32_0 = arith.constant 0 : i32
    %c0_i32_1 = arith.constant 0 : i32
    return %c0_i32, %c0_i32_0 : i32, i32
  }
  func.func @transform_2(%arg0: i32) -> (i32, i32) {
    %c0_i32 = arith.constant 0 : i32
    %c0_i32_0 = arith.constant 0 : i32
    %c0_i32_1 = arith.constant 0 : i32
    return %c0_i32, %c0_i32_0 : i32, i32
  }
  func.func @transform_3(%arg0: i32) -> (i32, i32) {
    %c0_i32 = arith.constant 0 : i32
    %c0_i32_0 = arith.constant 0 : i32
    %c0_i32_1 = arith.constant 0 : i32
    return %c0_i32, %c0_i32_0 : i32, i32
  }
  func.func @transform_4(%arg0: i32) -> (i32, i32) {
    %c0_i32 = arith.constant 0 : i32
    %c0_i32_0 = arith.constant 0 : i32
    %c0_i32_1 = arith.constant 0 : i32
    return %c0_i32, %c0_i32_0 : i32, i32
  }
  func.func @transform_5(%arg0: i32) -> (i32, i32) {
    %c0_i32 = arith.constant 0 : i32
    %c0_i32_0 = arith.constant 0 : i32
    %c0_i32_1 = arith.constant 0 : i32
    return %c0_i32, %c0_i32_0 : i32, i32
  }
  func.func @transform_6(%arg0: i32) -> (i32, i32) {
    %c0_i32 = arith.constant 0 : i32
    %c0_i32_0 = arith.constant 0 : i32
    %c0_i32_1 = arith.constant 0 : i32
    return %c0_i32, %c0_i32_0 : i32, i32
  }
  func.func @transform_7(%arg0: i32) -> (i32, i32) {
    %c0_i32 = arith.constant 0 : i32
    %c0_i32_0 = arith.constant 0 : i32
    %c0_i32_1 = arith.constant 0 : i32
    return %c0_i32, %c0_i32_0 : i32, i32
  }
  func.func @transform_8(%arg0: i32) -> (i32, i32) {
    %c0_i32 = arith.constant 0 : i32
    %c0_i32_0 = arith.constant 0 : i32
    %c0_i32_1 = arith.constant 0 : i32
    return %c0_i32, %c0_i32_0 : i32, i32
  }
  func.func @transform_9(%arg0: i32) -> (i32, i32) {
    %c0_i32 = arith.constant 0 : i32
    %c0_i32_0 = arith.constant 0 : i32
    %c0_i32_1 = arith.constant 0 : i32
    return %c0_i32, %c0_i32_0 : i32, i32
  }
}

</mosaic_0001>

<llo_original>
// kernel: lstm_model_forward.1
$region0: #{lstm_model_forward.1}
  #allocation0 [shape = 'u32[]', space=smem, size = 0x4, offset = 0x4, fixed_abs, tag = 'smem constant byte address 0x4 - core index']
  #allocation1 [shape = 'u32[144,128]{1,0:T(1,128)}', space=vmem, size = 0x12000, scoped, tag = 'internal scratch']
  #allocation2 [shape = 'f32[64,128]{1,0:T(8,128)}', space=vmem, size = 0x8000, scoped, tag = 'scratch operand']
  #allocation3 [shape = 'f32[64,512]{1,0:T(8,128)}', space=vmem, size = 0x20000, scoped, tag = 'scratch operand']
  #allocation4 [shape = 'f32[2,8,128]{2,1,0:T(8,128)}', space=vmem, size = 0x2000, scoped, tag = 'scratch operand']
  #allocation5 [shape = 'f32[2,8,128]{2,1,0:T(8,128)}', space=vmem, size = 0x2000, scoped, tag = 'scratch operand']
  %s0 = inlined_call_operand.vmem [shape: f32[64,4], index: 0, kind: input, shape index: {}]
  %s1 = inlined_call_operand.vmem [shape: f32[4,512], index: 1, kind: input, shape index: {}]
  %s2 = inlined_call_operand.vmem [shape: f32[128,512], index: 2, kind: input, shape index: {}]
  %s3 = inlined_call_operand.vmem [shape: f32[1,512], index: 3, kind: input, shape index: {}]
  %s4 = inlined_call_operand.vmem [shape: f32[128,512], index: 4, kind: input, shape index: {}]
  %s5 = inlined_call_operand.vmem [shape: f32[128,512], index: 5, kind: input, shape index: {}]
  %s6 = inlined_call_operand.vmem [shape: f32[1,512], index: 6, kind: input, shape index: {}]
  %s7 = inlined_call_operand.vmem [shape: f32[128,128], index: 7, kind: input, shape index: {}]
  %s8 = inlined_call_operand.vmem [shape: f32[1,128], index: 8, kind: input, shape index: {}]
  %s9 = inlined_call_operand.vmem [shape: f32[8,128], index: 9, kind: output, shape index: {}]
  %s10 = sld [smem:[#allocation0]]
  $region68: #{lstm_model_forward.1} parent=0
    _
  %s12 = ssub.s32 1, %s10
  %s13 = scalar_select 0, %s12, %s10
  // Predicated region
  $region2: #{lstm_model_forward.1} parent=0 // pred_check
    _
  $region3: #{lstm_model_forward.1} parent=0 // pred_check_branch
    %15 = sbr.rel (0) target = $region5
  $region4: #{lstm_model_forward.1} parent=0 // pred_region
    _
  $region5: #{lstm_model_forward.1} parent=0 // pred_fallthru
    _
  // Predicated region
  $region6: #{lstm_model_forward.1} parent=0 // pred_check
    _
  $region7: #{lstm_model_forward.1} parent=0 // pred_check_branch
    %17 = sbr.rel (0) target = $region9
  $region8: #{lstm_model_forward.1} parent=0 // pred_region
    _
  $region9: #{lstm_model_forward.1} parent=0 // pred_fallthru
    _
  // Predicated region
  $region10: #{lstm_model_forward.1} parent=0 // pred_check
    _
  $region11: #{lstm_model_forward.1} parent=0 // pred_check_branch
    %19 = sbr.rel (0) target = $region13
  $region12: #{lstm_model_forward.1} parent=0 // pred_region
    _
  $region13: #{lstm_model_forward.1} parent=0 // pred_fallthru
    _
  // Predicated region
  $region14: #{lstm_model_forward.1} parent=0 // pred_check
    _
  $region15: #{lstm_model_forward.1} parent=0 // pred_check_branch
    %21 = sbr.rel (0) target = $region17
  $region16: #{lstm_model_forward.1} parent=0 // pred_region
    _
  $region17: #{lstm_model_forward.1} parent=0 // pred_fallthru
    _
  // Predicated region
  $region18: #{lstm_model_forward.1} parent=0 // pred_check
    _
  $region19: #{lstm_model_forward.1} parent=0 // pred_check_branch
    %23 = sbr.rel (0) target = $region21
  $region20: #{lstm_model_forward.1} parent=0 // pred_region
    _
  $region21: #{lstm_model_forward.1} parent=0 // pred_fallthru
    _
  // Predicated region
  $region22: #{lstm_model_forward.1} parent=0 // pred_check
    _
  $region23: #{lstm_model_forward.1} parent=0 // pred_check_branch
    %25 = sbr.rel (0) target = $region25
  $region24: #{lstm_model_forward.1} parent=0 // pred_region
    _
  $region25: #{lstm_model_forward.1} parent=0 // pred_fallthru
    _
  // Predicated region
  $region26: #{lstm_model_forward.1} parent=0 // pred_check
    _
  $region27: #{lstm_model_forward.1} parent=0 // pred_check_branch
    %27 = sbr.rel (0) target = $region29
  $region28: #{lstm_model_forward.1} parent=0 // pred_region
    _
  $region29: #{lstm_model_forward.1} parent=0 // pred_fallthru
    _
  // Predicated region
  $region30: #{lstm_model_forward.1} parent=0 // pred_check
    _
  $region31: #{lstm_model_forward.1} parent=0 // pred_check_branch
    %29 = sbr.rel (0) target = $region33
  $region32: #{lstm_model_forward.1} parent=0 // pred_region
    _
  $region33: #{lstm_model_forward.1} parent=0 // pred_fallthru
    _
  // Predicated region
  $region34: #{lstm_model_forward.1} parent=0 // pred_check
    _
  $region35: #{lstm_model_forward.1} parent=0 // pred_check_branch
    %31 = sbr.rel (0) target = $region37
  $region36: #{lstm_model_forward.1} parent=0 // pred_region
    _
  $region37: #{lstm_model_forward.1} parent=0 // pred_fallthru
    _
  %p32 = scmp.eq.s32.totalorder 0, 0
  // Predicated region
  $region38: #{lstm_model_forward.1} parent=0 // pred_check
    %p33 = pneg %p32
  $region39: #{lstm_model_forward.1} parent=0 // pred_check_branch
    %35 = sbr.rel (%p33) target = $region41
  $region40: #{lstm_model_forward.1} parent=0 // pred_region
    %36 = vst [vmem:[#allocation4] sm:$0xff] 0.0
    %37 = vst [vmem:[#allocation4 + $0x8] sm:$0xff] 0.0
    %38 = vst [vmem:[#allocation5] sm:$0xff] 0.0
    %39 = vst [vmem:[#allocation5 + $0x8] sm:$0xff] 0.0
  $region41: #{lstm_model_forward.1} parent=0 // pred_fallthru
    _
  %v40 = vld [vmem:[%s0] sm:$0xff]
  %v41 = vld [vmem:[%s0 + $0x8] sm:$0xff]
  %v42 = vld [vmem:[%s0 + $0x10] sm:$0xff]
  %v43 = vld [vmem:[%s0 + $0x18] sm:$0xff]
  %v44 = vld [vmem:[%s0 + $0x20] sm:$0xff]
  %v45 = vld [vmem:[%s0 + $0x28] sm:$0xff]
  %v46 = vld [vmem:[%s0 + $0x30] sm:$0xff]
  %v47 = vld [vmem:[%s0 + $0x38] sm:$0xff]
  %v48 = vld [vmem:[%s1] sm:$0xff]
  %v49 = vld [vmem:[%s1 + $0x8] sm:$0xff]
  %v50 = vld [vmem:[%s3] sm:$0xf]
  %v52 = vlaneseq
  %v53 = vshrl.u32 %v52, 7
  %v54 = vsub.s32 0, %v53
  %v55 = vrot.slane %v50, %v54
  %v56 = vlaneseq
  %v57 = vshrl.u32 %v56, 7
  %v58 = vsub.s32 1, %v57
  %v59 = vrot.slane %v50, %v58
  %v60 = vlaneseq
  %v61 = vshrl.u32 %v60, 7
  %v62 = vsub.s32 2, %v61
  %v63 = vrot.slane %v50, %v62
  %v64 = vlaneseq
  %v65 = vshrl.u32 %v64, 7
  %v66 = vsub.s32 3, %v65
  %v67 = vrot.slane %v50, %v66
  %v74 = vcombine.high %v48, %v48
  %v75 = vcombine.high %v49, %v49
  %vm76 = vcmask 31744
  %v78 = vsel %vm76, %v40, 0
  %v81 = vsel %vm76, %v41, 0
  %v84 = vsel %vm76, %v42, 0
  %v87 = vsel %vm76, %v43, 0
  %v90 = vsel %vm76, %v44, 0
  %v93 = vsel %vm76, %v45, 0
  %v96 = vsel %vm76, %v46, 0
  %v99 = vsel %vm76, %v47, 0
  %vm101 = vcmask 1043456
  %v102 = vsel %vm101, %v48, 0
  %v104 = vsel %vm101, %v74, 0
  %v106 = vsel %vm101, %v49, 0
  %v108 = vsel %vm101, %v75, 0
  %110 = vmatprep.subr.mxu0 %v104
  %111 = vmatpush1.msra.mxu0 %v102
  %112 = vmatprep.subr.mxu0 0.0
  %113 = vmatpush1.msra.mxu0 0.0
  %114 = vmatprep.subr.mxu0 0.0
  %115 = vmatpush1.msra.mxu0 0.0
  %116 = vmatprep.subr.mxu0 0.0
  %117 = vmatpush1.msra.mxu0 0.0
  %118 = vmatprep.subr.mxu0 0.0
  %119 = vmatpush1.msra.mxu0 0.0
  %120 = vmatprep.subr.mxu0 0.0
  %121 = vmatpush1.msra.mxu0 0.0
  %122 = vmatprep.subr.mxu0 0.0
  %123 = vmatpush1.msra.mxu0 0.0
  %124 = vmatprep.subr.mxu0 0.0
  %125 = vmatpush1.msra.mxu0 0.0
  %126 = vmatprep.subr.mxu0 0.0
  %127 = vmatpush1.msra.mxu0 0.0
  %128 = vmatprep.subr.mxu0 0.0
  %129 = vmatpush1.msra.mxu0 0.0
  %130 = vmatprep.subr.mxu0 0.0
  %131 = vmatpush1.msra.mxu0 0.0
  %132 = vmatprep.subr.mxu0 0.0
  %133 = vmatpush1.msra.mxu0 0.0
  %134 = vmatprep.subr.mxu0 0.0
  %135 = vmatpush1.msra.mxu0 0.0
  %136 = vmatprep.subr.mxu0 0.0
  %137 = vmatpush1.msra.mxu0 0.0
  %138 = vmatprep.subr.mxu0 0.0
  %139 = vmatpush1.msra.mxu0 0.0
  %140 = vmatprep.subr.mxu0 0.0
  %141 = vmatpush1.msra.mxu0 0.0
  %142 = vmatprep.subr.mxu0 0.0
  %143 = vmatpush1.msra.mxu0 0.0
  %144 = vmatprep.subr.mxu0 0.0
  %145 = vmatpush1.msra.mxu0 0.0
  %146 = vmatprep.subr.mxu0 0.0
  %147 = vmatpush1.msra.mxu0 0.0
  %148 = vmatprep.subr.mxu0 0.0
  %149 = vmatpush1.msra.mxu0 0.0
  %150 = vmatprep.subr.mxu0 0.0
  %151 = vmatpush1.msra.mxu0 0.0
  %152 = vmatprep.subr.mxu0 0.0
  %153 = vmatpush1.msra.mxu0 0.0
  %154 = vmatprep.subr.mxu0 0.0
  %155 = vmatpush1.msra.mxu0 0.0
  %156 = vmatprep.subr.mxu0 0.0
  %157 = vmatpush1.msra.mxu0 0.0
  %158 = vmatprep.subr.mxu0 0.0
  %159 = vmatpush1.msra.mxu0 0.0
  %160 = vmatprep.subr.mxu0 0.0
  %161 = vmatpush1.msra.mxu0 0.0
  %162 = vmatprep.subr.mxu0 0.0
  %163 = vmatpush1.msra.mxu0 0.0
  %164 = vmatprep.subr.mxu0 0.0
  %165 = vmatpush1.msra.mxu0 0.0
  %166 = vmatprep.subr.mxu0 0.0
  %167 = vmatpush1.msra.mxu0 0.0
  %168 = vmatprep.subr.mxu0 0.0
  %169 = vmatpush1.msra.mxu0 0.0
  %170 = vmatprep.subr.mxu0 0.0
  %171 = vmatpush1.msra.mxu0 0.0
  %172 = vmatprep.subr.mxu0 0.0
  %173 = vmatpush1.msra.mxu0 0.0
  %174 = vmatprep.mubr.f32.mxu0 0.0
  %175 = vmatmul.mubr.f32.gmra.mrb[0].mxu0 %v78
  %v176 = vpop.f32.mrb[0].mxu0
  %v177 = vadd.f32 %v55, %v176
  %v178 = vpop.f32.mrb[0].mxu0
  %v179 = vadd.f32 %v59, %v178
  %180 = vmatprep.mubr.f32.mxu0 0.0
  %181 = vmatmul.mubr.f32.gmra.mrb[0].mxu0 %v81
  %v182 = vpop.f32.mrb[0].mxu0
  %v183 = vadd.f32 %v55, %v182
  %v184 = vpop.f32.mrb[0].mxu0
  %v185 = vadd.f32 %v59, %v184
  %186 = vmatprep.mubr.f32.mxu0 0.0
  %187 = vmatmul.mubr.f32.gmra.mrb[0].mxu0 %v84
  %v188 = vpop.f32.mrb[0].mxu0
  %v189 = vadd.f32 %v55, %v188
  %v190 = vpop.f32.mrb[0].mxu0
  %v191 = vadd.f32 %v59, %v190
  %192 = vmatprep.mubr.f32.mxu0 0.0
  %193 = vmatmul.mubr.f32.gmra.mrb[0].mxu0 %v87
  %v194 = vpop.f32.mrb[0].mxu0
  %v195 = vadd.f32 %v55, %v194
  %v196 = vpop.f32.mrb[0].mxu0
  %v197 = vadd.f32 %v59, %v196
  %198 = vmatprep.mubr.f32.mxu0 0.0
  %199 = vmatmul.mubr.f32.gmra.mrb[0].mxu0 %v90
  %v200 = vpop.f32.mrb[0].mxu0
  %v201 = vadd.f32 %v55, %v200
  %v202 = vpop.f32.mrb[0].mxu0
  %v203 = vadd.f32 %v59, %v202
  %204 = vmatprep.mubr.f32.mxu0 0.0
  %205 = vmatmul.mubr.f32.gmra.mrb[0].mxu0 %v93
  %v206 = vpop.f32.mrb[0].mxu0
  %v207 = vadd.f32 %v55, %v206
  %v208 = vpop.f32.mrb[0].mxu0
  %v209 = vadd.f32 %v59, %v208
  %210 = vmatprep.mubr.f32.mxu0 0.0
  %211 = vmatmul.mubr.f32.gmra.mrb[0].mxu0 %v96
  %v212 = vpop.f32.mrb[0].mxu0
  %v213 = vadd.f32 %v55, %v212
  %v214 = vpop.f32.mrb[0].mxu0
  %v215 = vadd.f32 %v59, %v214
  %216 = vmatprep.mubr.f32.mxu0 0.0
  %217 = vmatmul.mubr.f32.gmra.mrb[0].mxu0 %v99
  %v218 = vpop.f32.mrb[0].mxu0
  %v219 = vadd.f32 %v55, %v218
  %v220 = vpop.f32.mrb[0].mxu0
  %v221 = vadd.f32 %v59, %v220
  %222 = vdwg.mxu0
  %223 = vmatprep.subr.mxu0 %v108
  %224 = vmatpush1.msra.mxu0 %v106
  %225 = vmatprep.subr.mxu0 0.0
  %226 = vmatpush1.msra.mxu0 0.0
  %227 = vmatprep.subr.mxu0 0.0
  %228 = vmatpush1.msra.mxu0 0.0
  %229 = vmatprep.subr.mxu0 0.0
  %230 = vmatpush1.msra.mxu0 0.0
  %231 = vmatprep.subr.mxu0 0.0
  %232 = vmatpush1.msra.mxu0 0.0
  %233 = vmatprep.subr.mxu0 0.0
  %234 = vmatpush1.msra.mxu0 0.0
  %235 = vmatprep.subr.mxu0 0.0
  %236 = vmatpush1.msra.mxu0 0.0
  %237 = vmatprep.subr.mxu0 0.0
  %238 = vmatpush1.msra.mxu0 0.0
  %239 = vmatprep.subr.mxu0 0.0
  %240 = vmatpush1.msra.mxu0 0.0
  %241 = vmatprep.subr.mxu0 0.0
  %242 = vmatpush1.msra.mxu0 0.0
  %243 = vmatprep.subr.mxu0 0.0
  %244 = vmatpush1.msra.mxu0 0.0
  %245 = vmatprep.subr.mxu0 0.0
  %246 = vmatpush1.msra.mxu0 0.0
  %247 = vmatprep.subr.mxu0 0.0
  %248 = vmatpush1.msra.mxu0 0.0
  %249 = vmatprep.subr.mxu0 0.0
  %250 = vmatpush1.msra.mxu0 0.0
  %251 = vmatprep.subr.mxu0 0.0
  %252 = vmatpush1.msra.mxu0 0.0
  %253 = vmatprep.subr.mxu0 0.0
  %254 = vmatpush1.msra.mxu0 0.0
  %255 = vmatprep.subr.mxu0 0.0
  %256 = vmatpush1.msra.mxu0 0.0
  %257 = vmatprep.subr.mxu0 0.0
  %258 = vmatpush1.msra.mxu0 0.0
  %259 = vmatprep.subr.mxu0 0.0
  %260 = vmatpush1.msra.mxu0 0.0
  %261 = vmatprep.subr.mxu0 0.0
  %262 = vmatpush1.msra.mxu0 0.0
  %263 = vmatprep.subr.mxu0 0.0
  %264 = vmatpush1.msra.mxu0 0.0
  %265 = vmatprep.subr.mxu0 0.0
  %266 = vmatpush1.msra.mxu0 0.0
  %267 = vmatprep.subr.mxu0 0.0
  %268 = vmatpush1.msra.mxu0 0.0
  %269 = vmatprep.subr.mxu0 0.0
  %270 = vmatpush1.msra.mxu0 0.0
  %271 = vmatprep.subr.mxu0 0.0
  %272 = vmatpush1.msra.mxu0 0.0
  %273 = vmatprep.subr.mxu0 0.0
  %274 = vmatpush1.msra.mxu0 0.0
  %275 = vmatprep.subr.mxu0 0.0
  %276 = vmatpush1.msra.mxu0 0.0
  %277 = vmatprep.subr.mxu0 0.0
  %278 = vmatpush1.msra.mxu0 0.0
  %279 = vmatprep.subr.mxu0 0.0
  %280 = vmatpush1.msra.mxu0 0.0
  %281 = vmatprep.subr.mxu0 0.0
  %282 = vmatpush1.msra.mxu0 0.0
  %283 = vmatprep.subr.mxu0 0.0
  %284 = vmatpush1.msra.mxu0 0.0
  %285 = vmatprep.subr.mxu0 0.0
  %286 = vmatpush1.msra.mxu0 0.0
  %287 = vmatprep.mubr.f32.mxu0 0.0
  %288 = vmatmul.mubr.f32.gmra.mrb[0].mxu0 %v78
  %v289 = vpop.f32.mrb[0].mxu0
  %v290 = vadd.f32 %v63, %v289
  %v291 = vpop.f32.mrb[0].mxu0
  %v292 = vadd.f32 %v67, %v291
  %293 = vmatprep.mubr.f32.mxu0 0.0
  %294 = vmatmul.mubr.f32.gmra.mrb[0].mxu0 %v81
  %v295 = vpop.f32.mrb[0].mxu0
  %v296 = vadd.f32 %v63, %v295
  %v297 = vpop.f32.mrb[0].mxu0
  %v298 = vadd.f32 %v67, %v297
  %299 = vmatprep.mubr.f32.mxu0 0.0
  %300 = vmatmul.mubr.f32.gmra.mrb[0].mxu0 %v84
  %v301 = vpop.f32.mrb[0].mxu0
  %v302 = vadd.f32 %v63, %v301
  %v303 = vpop.f32.mrb[0].mxu0
  %v304 = vadd.f32 %v67, %v303
  %305 = vmatprep.mubr.f32.mxu0 0.0
  %306 = vmatmul.mubr.f32.gmra.mrb[0].mxu0 %v87
  %v307 = vpop.f32.mrb[0].mxu0
  %v308 = vadd.f32 %v63, %v307
  %v309 = vpop.f32.mrb[0].mxu0
  %v310 = vadd.f32 %v67, %v309
  %311 = vmatprep.mubr.f32.mxu0 0.0
  %312 = vmatmul.mubr.f32.gmra.mrb[0].mxu0 %v90
  %v313 = vpop.f32.mrb[0].mxu0
  %v314 = vadd.f32 %v63, %v313
  %v315 = vpop.f32.mrb[0].mxu0
  %v316 = vadd.f32 %v67, %v315
  %317 = vmatprep.mubr.f32.mxu0 0.0
  %318 = vmatmul.mubr.f32.gmra.mrb[0].mxu0 %v93
  %v319 = vpop.f32.mrb[0].mxu0
  %v320 = vadd.f32 %v63, %v319
  %v321 = vpop.f32.mrb[0].mxu0
  %v322 = vadd.f32 %v67, %v321
  %323 = vmatprep.mubr.f32.mxu0 0.0
  %324 = vmatmul.mubr.f32.gmra.mrb[0].mxu0 %v96
  %v325 = vpop.f32.mrb[0].mxu0
  %v326 = vadd.f32 %v63, %v325
  %v327 = vpop.f32.mrb[0].mxu0
  %v328 = vadd.f32 %v67, %v327
  %329 = vmatprep.mubr.f32.mxu0 0.0
  %330 = vmatmul.mubr.f32.gmra.mrb[0].mxu0 %v99
  %v331 = vpop.f32.mrb[0].mxu0
  %v332 = vadd.f32 %v63, %v331
  %v333 = vpop.f32.mrb[0].mxu0
  %v334 = vadd.f32 %v67, %v333
  %335 = vdwg.mxu0
  %336 = vst [vmem:[#allocation3] sm:$0xff] %v177
  %337 = vst [vmem:[#allocation3 + $0x8] sm:$0xff] %v179
  %338 = vst [vmem:[#allocation3 + $0x10] sm:$0xff] %v290
  %339 = vst [vmem:[#allocation3 + $0x18] sm:$0xff] %v292
  %340 = vst [vmem:[#allocation3 + $0x20] sm:$0xff] %v183
  %341 = vst [vmem:[#allocation3 + $0x28] sm:$0xff] %v185
  %342 = vst [vmem:[#allocation3 + $0x30] sm:$0xff] %v296
  %343 = vst [vmem:[#allocation3 + $0x38] sm:$0xff] %v298
  %344 = vst [vmem:[#allocation3 + $0x40] sm:$0xff] %v189
  %345 = vst [vmem:[#allocation3 + $0x48] sm:$0xff] %v191
  %346 = vst [vmem:[#allocation3 + $0x50] sm:$0xff] %v302
  %347 = vst [vmem:[#allocation3 + $0x58] sm:$0xff] %v304
  %348 = vst [vmem:[#allocation3 + $0x60] sm:$0xff] %v195
  %349 = vst [vmem:[#allocation3 + $0x68] sm:$0xff] %v197
  %350 = vst [vmem:[#allocation3 + $0x70] sm:$0xff] %v308
  %351 = vst [vmem:[#allocation3 + $0x78] sm:$0xff] %v310
  %352 = vst [vmem:[#allocation3 + $0x80] sm:$0xff] %v201
  %353 = vst [vmem:[#allocation3 + $0x88] sm:$0xff] %v203
  %354 = vst [vmem:[#allocation3 + $0x90] sm:$0xff] %v314
  %355 = vst [vmem:[#allocation3 + $0x98] sm:$0xff] %v316
  %356 = vst [vmem:[#allocation3 + $0xa0] sm:$0xff] %v207
  %357 = vst [vmem:[#allocation3 + $0xa8] sm:$0xff] %v209
  %358 = vst [vmem:[#allocation3 + $0xb0] sm:$0xff] %v320
  %359 = vst [vmem:[#allocation3 + $0xb8] sm:$0xff] %v322
  %360 = vst [vmem:[#allocation3 + $0xc0] sm:$0xff] %v213
  %361 = vst [vmem:[#allocation3 + $0xc8] sm:$0xff] %v215
  %362 = vst [vmem:[#allocation3 + $0xd0] sm:$0xff] %v326
  %363 = vst [vmem:[#allocation3 + $0xd8] sm:$0xff] %v328
  %364 = vst [vmem:[#allocation3 + $0xe0] sm:$0xff] %v219
  %365 = vst [vmem:[#allocation3 + $0xe8] sm:$0xff] %v221
  %366 = vst [vmem:[#allocation3 + $0xf0] sm:$0xff] %v332
  %367 = vst [vmem:[#allocation3 + $0xf8] sm:$0xff] %v334
  %v368 = vld [vmem:[#allocation4] sm:$0xff]
  %v369 = vld [vmem:[#allocation5] sm:$0xff]
  loop: start=0, step=1, limit=4
  $region42: #{lstm_model_forward.1} parent=0 // loop_pre_header
    _
  $region43: #{lstm_model_forward.1} parent=0 // loop_header
    %s371 = sphi 0, %s375
    %p372 = scmp.ge.s32.totalorder %s371, 4
    %v376 = vphi %v368, %v857
    %v377 = vphi %v369, %v855
  $region44: #{lstm_model_forward.1} parent=0 // loop_header_branch
    %374 = sbr.rel (%p372) target = $region48
  $region45: #{lstm_model_forward.1} parent=0 // loop_body
    %s378 = smul.u32 %s371, 2
    %s379 = sadd.s32 %s378, 1
    %s380 = smul.u32 %s371, 16
    %s381 = sshra.s32 %s380, 3
    %s382 = sand.u32 %s380, 7
    %s383 = smul.u32 %s381, 4
    %s384 = smul.addr %s383, 8
    %s385 = scalar_lea.vmem [#allocation3], %s384
    %v386 = vld [vmem:[%s385] sm:$0xff]
    %v387 = vld [vmem:[%s385 + $0x8] sm:$0xff]
    %v388 = vld [vmem:[%s385 + $0x10] sm:$0xff]
    %v389 = vld [vmem:[%s385 + $0x18] sm:$0xff]
    %v390 = vld [vmem:[%s2] sm:$0xff]
    %v391 = vld [vmem:[%s2 + $0x8] sm:$0xff]
    %v392 = vld [vmem:[%s2 + $0x10] sm:$0xff]
    %v393 = vld [vmem:[%s2 + $0x18] sm:$0xff]
    %v394 = vld [vmem:[%s2 + $0x20] sm:$0xff]
    %v395 = vld [vmem:[%s2 + $0x28] sm:$0xff]
    %v396 = vld [vmem:[%s2 + $0x30] sm:$0xff]
    %v397 = vld [vmem:[%s2 + $0x38] sm:$0xff]
    %v398 = vld [vmem:[%s2 + $0x40] sm:$0xff]
    %v399 = vld [vmem:[%s2 + $0x48] sm:$0xff]
    %v400 = vld [vmem:[%s2 + $0x50] sm:$0xff]
    %v401 = vld [vmem:[%s2 + $0x58] sm:$0xff]
    %v402 = vld [vmem:[%s2 + $0x60] sm:$0xff]
    %v403 = vld [vmem:[%s2 + $0x68] sm:$0xff]
    %v404 = vld [vmem:[%s2 + $0x70] sm:$0xff]
    %v405 = vld [vmem:[%s2 + $0x78] sm:$0xff]
    %v406 = vld [vmem:[%s2 + $0x80] sm:$0xff]
    %v407 = vld [vmem:[%s2 + $0x88] sm:$0xff]
    %v408 = vld [vmem:[%s2 + $0x90] sm:$0xff]
    %v409 = vld [vmem:[%s2 + $0x98] sm:$0xff]
    %v410 = vld [vmem:[%s2 + $0xa0] sm:$0xff]
    %v411 = vld [vmem:[%s2 + $0xa8] sm:$0xff]
    %v412 = vld [vmem:[%s2 + $0xb0] sm:$0xff]
    %v413 = vld [vmem:[%s2 + $0xb8] sm:$0xff]
    %v414 = vld [vmem:[%s2 + $0xc0] sm:$0xff]
    %v415 = vld [vmem:[%s2 + $0xc8] sm:$0xff]
    %v416 = vld [vmem:[%s2 + $0xd0] sm:$0xff]
    %v417 = vld [vmem:[%s2 + $0xd8] sm:$0xff]
    %v418 = vld [vmem:[%s2 + $0xe0] sm:$0xff]
    %v419 = vld [vmem:[%s2 + $0xe8] sm:$0xff]
    %v420 = vld [vmem:[%s2 + $0xf0] sm:$0xff]
    %v421 = vld [vmem:[%s2 + $0xf8] sm:$0xff]
    %v422 = vld [vmem:[%s2 + $0x100] sm:$0xff]
    %v423 = vld [vmem:[%s2 + $0x108] sm:$0xff]
    %v424 = vld [vmem:[%s2 + $0x110] sm:$0xff]
    %v425 = vld [vmem:[%s2 + $0x118] sm:$0xff]
    %v426 = vld [vmem:[%s2 + $0x120] sm:$0xff]
    %v427 = vld [vmem:[%s2 + $0x128] sm:$0xff]
    %v428 = vld [vmem:[%s2 + $0x130] sm:$0xff]
    %v429 = vld [vmem:[%s2 + $0x138] sm:$0xff]
    %v430 = vld [vmem:[%s2 + $0x140] sm:$0xff]
    %v431 = vld [vmem:[%s2 + $0x148] sm:$0xff]
    %v432 = vld [vmem:[%s2 + $0x150] sm:$0xff]
    %v433 = vld [vmem:[%s2 + $0x158] sm:$0xff]
    %v434 = vld [vmem:[%s2 + $0x160] sm:$0xff]
    %v435 = vld [vmem:[%s2 + $0x168] sm:$0xff]
    %v436 = vld [vmem:[%s2 + $0x170] sm:$0xff]
    %v437 = vld [vmem:[%s2 + $0x178] sm:$0xff]
    %v438 = vld [vmem:[%s2 + $0x180] sm:$0xff]
    %v439 = vld [vmem:[%s2 + $0x188] sm:$0xff]
    %v440 = vld [vmem:[%s2 + $0x190] sm:$0xff]
    %v441 = vld [vmem:[%s2 + $0x198] sm:$0xff]
    %v442 = vld [vmem:[%s2 + $0x1a0] sm:$0xff]
    %v443 = vld [vmem:[%s2 + $0x1a8] sm:$0xff]
    %v444 = vld [vmem:[%s2 + $0x1b0] sm:$0xff]
    %v445 = vld [vmem:[%s2 + $0x1b8] sm:$0xff]
    %v446 = vld [vmem:[%s2 + $0x1c0] sm:$0xff]
    %v447 = vld [vmem:[%s2 + $0x1c8] sm:$0xff]
    %v448 = vld [vmem:[%s2 + $0x1d0] sm:$0xff]
    %v449 = vld [vmem:[%s2 + $0x1d8] sm:$0xff]
    %v450 = vld [vmem:[%s2 + $0x1e0] sm:$0xff]
    %v451 = vld [vmem:[%s2 + $0x1e8] sm:$0xff]
    %v452 = vld [vmem:[%s2 + $0x1f0] sm:$0xff]
    %v453 = vld [vmem:[%s2 + $0x1f8] sm:$0xff]
    %454 = vmatprep.subr.mxu0 %v391
    %455 = vmatpush1.msra.mxu0 %v390
    %456 = vmatprep.subr.mxu0 %v395
    %457 = vmatpush1.msra.mxu0 %v394
    %458 = vmatprep.subr.mxu0 %v399
    %459 = vmatpush1.msra.mxu0 %v398
    %460 = vmatprep.subr.mxu0 %v403
    %461 = vmatpush1.msra.mxu0 %v402
    %462 = vmatprep.subr.mxu0 %v407
    %463 = vmatpush1.msra.mxu0 %v406
    %464 = vmatprep.subr.mxu0 %v411
    %465 = vmatpush1.msra.mxu0 %v410
    %466 = vmatprep.subr.mxu0 %v415
    %467 = vmatpush1.msra.mxu0 %v414
    %468 = vmatprep.subr.mxu0 %v419
    %469 = vmatpush1.msra.mxu0 %v418
    %470 = vmatprep.subr.mxu0 %v423
    %471 = vmatpush1.msra.mxu0 %v422
    %472 = vmatprep.subr.mxu0 %v427
    %473 = vmatpush1.msra.mxu0 %v426
    %474 = vmatprep.subr.mxu0 %v431
    %475 = vmatpush1.msra.mxu0 %v430
    %476 = vmatprep.subr.mxu0 %v435
    %477 = vmatpush1.msra.mxu0 %v434
    %478 = vmatprep.subr.mxu0 %v439
    %479 = vmatpush1.msra.mxu0 %v438
    %480 = vmatprep.subr.mxu0 %v443
    %481 = vmatpush1.msra.mxu0 %v442
    %482 = vmatprep.subr.mxu0 %v447
    %483 = vmatpush1.msra.mxu0 %v446
    %484 = vmatprep.subr.mxu0 %v451
    %485 = vmatpush1.msra.mxu0 %v450
    %486 = vmatprep.subr.mxu0 0.0
    %487 = vmatpush1.msra.mxu0 0.0
    %488 = vmatprep.subr.mxu0 0.0
    %489 = vmatpush1.msra.mxu0 0.0
    %490 = vmatprep.subr.mxu0 0.0
    %491 = vmatpush1.msra.mxu0 0.0
    %492 = vmatprep.subr.mxu0 0.0
    %493 = vmatpush1.msra.mxu0 0.0
    %494 = vmatprep.subr.mxu0 0.0
    %495 = vmatpush1.msra.mxu0 0.0
    %496 = vmatprep.subr.mxu0 0.0
    %497 = vmatpush1.msra.mxu0 0.0
    %498 = vmatprep.subr.mxu0 0.0
    %499 = vmatpush1.msra.mxu0 0.0
    %500 = vmatprep.subr.mxu0 0.0
    %501 = vmatpush1.msra.mxu0 0.0
    %502 = vmatprep.subr.mxu0 0.0
    %503 = vmatpush1.msra.mxu0 0.0
    %504 = vmatprep.subr.mxu0 0.0
    %505 = vmatpush1.msra.mxu0 0.0
    %506 = vmatprep.subr.mxu0 0.0
    %507 = vmatpush1.msra.mxu0 0.0
    %508 = vmatprep.subr.mxu0 0.0
    %509 = vmatpush1.msra.mxu0 0.0
    %510 = vmatprep.subr.mxu0 0.0
    %511 = vmatpush1.msra.mxu0 0.0
    %512 = vmatprep.subr.mxu0 0.0
    %513 = vmatpush1.msra.mxu0 0.0
    %514 = vmatprep.subr.mxu0 0.0
    %515 = vmatpush1.msra.mxu0 0.0
    %516 = vmatprep.subr.mxu0 0.0
    %517 = vmatpush1.msra.mxu0 0.0
    %518 = vmatprep.mubr.f32.mxu0 0.0
    %519 = vmatmul.mubr.f32.gmra.mrb[0].mxu0 %v376
    %v520 = vpop.f32.mrb[0].mxu0
    %v521 = vadd.f32 0.0, %v520
    %v522 = vpop.f32.mrb[0].mxu0
    %v523 = vadd.f32 0.0, %v522
    %524 = vdwg.mxu0
    %525 = vmatprep.subr.mxu0 %v393
    %526 = vmatpush1.msra.mxu0 %v392
    %527 = vmatprep.subr.mxu0 %v397
    %528 = vmatpush1.msra.mxu0 %v396
    %529 = vmatprep.subr.mxu0 %v401
    %530 = vmatpush1.msra.mxu0 %v400
    %531 = vmatprep.subr.mxu0 %v405
    %532 = vmatpush1.msra.mxu0 %v404
    %533 = vmatprep.subr.mxu0 %v409
    %534 = vmatpush1.msra.mxu0 %v408
    %535 = vmatprep.subr.mxu0 %v413
    %536 = vmatpush1.msra.mxu0 %v412
    %537 = vmatprep.subr.mxu0 %v417
    %538 = vmatpush1.msra.mxu0 %v416
    %539 = vmatprep.subr.mxu0 %v421
    %540 = vmatpush1.msra.mxu0 %v420
    %541 = vmatprep.subr.mxu0 %v425
    %542 = vmatpush1.msra.mxu0 %v424
    %543 = vmatprep.subr.mxu0 %v429
    %544 = vmatpush1.msra.mxu0 %v428
    %545 = vmatprep.subr.mxu0 %v433
    %546 = vmatpush1.msra.mxu0 %v432
    %547 = vmatprep.subr.mxu0 %v437
    %548 = vmatpush1.msra.mxu0 %v436
    %549 = vmatprep.subr.mxu0 %v441
    %550 = vmatpush1.msra.mxu0 %v440
    %551 = vmatprep.subr.mxu0 %v445
    %552 = vmatpush1.msra.mxu0 %v444
    %553 = vmatprep.subr.mxu0 %v449
    %554 = vmatpush1.msra.mxu0 %v448
    %555 = vmatprep.subr.mxu0 %v453
    %556 = vmatpush1.msra.mxu0 %v452
    %557 = vmatprep.subr.mxu0 0.0
    %558 = vmatpush1.msra.mxu0 0.0
    %559 = vmatprep.subr.mxu0 0.0
    %560 = vmatpush1.msra.mxu0 0.0
    %561 = vmatprep.subr.mxu0 0.0
    %562 = vmatpush1.msra.mxu0 0.0
    %563 = vmatprep.subr.mxu0 0.0
    %564 = vmatpush1.msra.mxu0 0.0
    %565 = vmatprep.subr.mxu0 0.0
    %566 = vmatpush1.msra.mxu0 0.0
    %567 = vmatprep.subr.mxu0 0.0
    %568 = vmatpush1.msra.mxu0 0.0
    %569 = vmatprep.subr.mxu0 0.0
    %570 = vmatpush1.msra.mxu0 0.0
    %571 = vmatprep.subr.mxu0 0.0
    %572 = vmatpush1.msra.mxu0 0.0
    %573 = vmatprep.subr.mxu0 0.0
    %574 = vmatpush1.msra.mxu0 0.0
    %575 = vmatprep.subr.mxu0 0.0
    %576 = vmatpush1.msra.mxu0 0.0
    %577 = vmatprep.subr.mxu0 0.0
    %578 = vmatpush1.msra.mxu0 0.0
    %579 = vmatprep.subr.mxu0 0.0
    %580 = vmatpush1.msra.mxu0 0.0
    %581 = vmatprep.subr.mxu0 0.0
    %582 = vmatpush1.msra.mxu0 0.0
    %583 = vmatprep.subr.mxu0 0.0
    %584 = vmatpush1.msra.mxu0 0.0
    %585 = vmatprep.subr.mxu0 0.0
    %586 = vmatpush1.msra.mxu0 0.0
    %587 = vmatprep.subr.mxu0 0.0
    %588 = vmatpush1.msra.mxu0 0.0
    %589 = vmatprep.mubr.f32.mxu0 0.0
    %590 = vmatmul.mubr.f32.gmra.mrb[0].mxu0 %v376
    %v591 = vpop.f32.mrb[0].mxu0
    %v592 = vadd.f32 0.0, %v591
    %v593 = vpop.f32.mrb[0].mxu0
    %v594 = vadd.f32 0.0, %v593
    %595 = vdwg.mxu0
    %v596 = vadd.f32 %v386, %v521
    %v597 = vadd.f32 %v387, %v523
    %v598 = vadd.f32 %v388, %v592
    %v599 = vadd.f32 %v389, %v594
    %v600 = vmul.f32 %v596, 0.5
    %v601 = vtanh.pop %v600
    %v602 = vmul.f32 %v601, 0.5
    %v603 = vadd.f32 %v602, 0.5
    %v604 = vmul.f32 %v597, 0.5
    %v605 = vtanh.pop %v604
    %v606 = vmul.f32 %v605, 0.5
    %v607 = vadd.f32 %v606, 0.5
    %v608 = vtanh.pop %v598
    %v609 = vmul.f32 %v599, 0.5
    %v610 = vtanh.pop %v609
    %v611 = vmul.f32 %v610, 0.5
    %v612 = vadd.f32 %v611, 0.5
    %v613 = vmul.f32 %v607, %v377
    %v614 = vmul.f32 %v603, %v608
    %v615 = vadd.f32 %v613, %v614
    %v616 = vtanh.pop %v615
    %v617 = vmul.f32 %v612, %v616
    %s618 = scalar_lea.vmem [#allocation2], %s380
    %619 = vst [vmem:[%s618] sm:$0xff] %v617
    %s620 = smul.u32 %s379, 8
    %s621 = sshra.s32 %s620, 3
    %s622 = sand.u32 %s620, 7
    %s623 = smul.u32 %s621, 4
    %s624 = smul.addr %s623, 8
    %s625 = scalar_lea.vmem [#allocation3], %s624
    %v626 = vld [vmem:[%s625] sm:$0xff]
    %v627 = vld [vmem:[%s625 + $0x8] sm:$0xff]
    %v628 = vld [vmem:[%s625 + $0x10] sm:$0xff]
    %v629 = vld [vmem:[%s625 + $0x18] sm:$0xff]
    %v630 = vld [vmem:[%s2] sm:$0xff]
    %v631 = vld [vmem:[%s2 + $0x8] sm:$0xff]
    %v632 = vld [vmem:[%s2 + $0x10] sm:$0xff]
    %v633 = vld [vmem:[%s2 + $0x18] sm:$0xff]
    %v634 = vld [vmem:[%s2 + $0x20] sm:$0xff]
    %v635 = vld [vmem:[%s2 + $0x28] sm:$0xff]
    %v636 = vld [vmem:[%s2 + $0x30] sm:$0xff]
    %v637 = vld [vmem:[%s2 + $0x38] sm:$0xff]
    %v638 = vld [vmem:[%s2 + $0x40] sm:$0xff]
    %v639 = vld [vmem:[%s2 + $0x48] sm:$0xff]
    %v640 = vld [vmem:[%s2 + $0x50] sm:$0xff]
    %v641 = vld [vmem:[%s2 + $0x58] sm:$0xff]
    %v642 = vld [vmem:[%s2 + $0x60] sm:$0xff]
    %v643 = vld [vmem:[%s2 + $0x68] sm:$0xff]
    %v644 = vld [vmem:[%s2 + $0x70] sm:$0xff]
    %v645 = vld [vmem:[%s2 + $0x78] sm:$0xff]
    %v646 = vld [vmem:[%s2 + $0x80] sm:$0xff]
    %v647 = vld [vmem:[%s2 + $0x88] sm:$0xff]
    %v648 = vld [vmem:[%s2 + $0x90] sm:$0xff]
    %v649 = vld [vmem:[%s2 + $0x98] sm:$0xff]
    %v650 = vld [vmem:[%s2 + $0xa0] sm:$0xff]
    %v651 = vld [vmem:[%s2 + $0xa8] sm:$0xff]
    %v652 = vld [vmem:[%s2 + $0xb0] sm:$0xff]
    %v653 = vld [vmem:[%s2 + $0xb8] sm:$0xff]
    %v654 = vld [vmem:[%s2 + $0xc0] sm:$0xff]
    %v655 = vld [vmem:[%s2 + $0xc8] sm:$0xff]
    %v656 = vld [vmem:[%s2 + $0xd0] sm:$0xff]
    %v657 = vld [vmem:[%s2 + $0xd8] sm:$0xff]
    %v658 = vld [vmem:[%s2 + $0xe0] sm:$0xff]
    %v659 = vld [vmem:[%s2 + $0xe8] sm:$0xff]
    %v660 = vld [vmem:[%s2 + $0xf0] sm:$0xff]
    %v661 = vld [vmem:[%s2 + $0xf8] sm:$0xff]
    %v662 = vld [vmem:[%s2 + $0x100] sm:$0xff]
    %v663 = vld [vmem:[%s2 + $0x108] sm:$0xff]
    %v664 = vld [vmem:[%s2 + $0x110] sm:$0xff]
    %v665 = vld [vmem:[%s2 + $0x118] sm:$0xff]
    %v666 = vld [vmem:[%s2 + $0x120] sm:$0xff]
    %v667 = vld [vmem:[%s2 + $0x128] sm:$0xff]
    %v668 = vld [vmem:[%s2 + $0x130] sm:$0xff]
    %v669 = vld [vmem:[%s2 + $0x138] sm:$0xff]
    %v670 = vld [vmem:[%s2 + $0x140] sm:$0xff]
    %v671 = vld [vmem:[%s2 + $0x148] sm:$0xff]
    %v672 = vld [vmem:[%s2 + $0x150] sm:$0xff]
    %v673 = vld [vmem:[%s2 + $0x158] sm:$0xff]
    %v674 = vld [vmem:[%s2 + $0x160] sm:$0xff]
    %v675 = vld [vmem:[%s2 + $0x168] sm:$0xff]
    %v676 = vld [vmem:[%s2 + $0x170] sm:$0xff]
    %v677 = vld [vmem:[%s2 + $0x178] sm:$0xff]
    %v678 = vld [vmem:[%s2 + $0x180] sm:$0xff]
    %v679 = vld [vmem:[%s2 + $0x188] sm:$0xff]
    %v680 = vld [vmem:[%s2 + $0x190] sm:$0xff]
    %v681 = vld [vmem:[%s2 + $0x198] sm:$0xff]
    %v682 = vld [vmem:[%s2 + $0x1a0] sm:$0xff]
    %v683 = vld [vmem:[%s2 + $0x1a8] sm:$0xff]
    %v684 = vld [vmem:[%s2 + $0x1b0] sm:$0xff]
    %v685 = vld [vmem:[%s2 + $0x1b8] sm:$0xff]
    %v686 = vld [vmem:[%s2 + $0x1c0] sm:$0xff]
    %v687 = vld [vmem:[%s2 + $0x1c8] sm:$0xff]
    %v688 = vld [vmem:[%s2 + $0x1d0] sm:$0xff]
    %v689 = vld [vmem:[%s2 + $0x1d8] sm:$0xff]
    %v690 = vld [vmem:[%s2 + $0x1e0] sm:$0xff]
    %v691 = vld [vmem:[%s2 + $0x1e8] sm:$0xff]
    %v692 = vld [vmem:[%s2 + $0x1f0] sm:$0xff]
    %v693 = vld [vmem:[%s2 + $0x1f8] sm:$0xff]
    %694 = vmatprep.subr.mxu0 %v631
    %695 = vmatpush1.msra.mxu0 %v630
    %696 = vmatprep.subr.mxu0 %v635
    %697 = vmatpush1.msra.mxu0 %v634
    %698 = vmatprep.subr.mxu0 %v639
    %699 = vmatpush1.msra.mxu0 %v638
    %700 = vmatprep.subr.mxu0 %v643
    %701 = vmatpush1.msra.mxu0 %v642
    %702 = vmatprep.subr.mxu0 %v647
    %703 = vmatpush1.msra.mxu0 %v646
    %704 = vmatprep.subr.mxu0 %v651
    %705 = vmatpush1.msra.mxu0 %v650
    %706 = vmatprep.subr.mxu0 %v655
    %707 = vmatpush1.msra.mxu0 %v654
    %708 = vmatprep.subr.mxu0 %v659
    %709 = vmatpush1.msra.mxu0 %v658
    %710 = vmatprep.subr.mxu0 %v663
    %711 = vmatpush1.msra.mxu0 %v662
    %712 = vmatprep.subr.mxu0 %v667
    %713 = vmatpush1.msra.mxu0 %v666
    %714 = vmatprep.subr.mxu0 %v671
    %715 = vmatpush1.msra.mxu0 %v670
    %716 = vmatprep.subr.mxu0 %v675
    %717 = vmatpush1.msra.mxu0 %v674
    %718 = vmatprep.subr.mxu0 %v679
    %719 = vmatpush1.msra.mxu0 %v678
    %720 = vmatprep.subr.mxu0 %v683
    %721 = vmatpush1.msra.mxu0 %v682
    %722 = vmatprep.subr.mxu0 %v687
    %723 = vmatpush1.msra.mxu0 %v686
    %724 = vmatprep.subr.mxu0 %v691
    %725 = vmatpush1.msra.mxu0 %v690
    %726 = vmatprep.subr.mxu0 0.0
    %727 = vmatpush1.msra.mxu0 0.0
    %728 = vmatprep.subr.mxu0 0.0
    %729 = vmatpush1.msra.mxu0 0.0
    %730 = vmatprep.subr.mxu0 0.0
    %731 = vmatpush1.msra.mxu0 0.0
    %732 = vmatprep.subr.mxu0 0.0
    %733 = vmatpush1.msra.mxu0 0.0
    %734 = vmatprep.subr.mxu0 0.0
    %735 = vmatpush1.msra.mxu0 0.0
    %736 = vmatprep.subr.mxu0 0.0
    %737 = vmatpush1.msra.mxu0 0.0
    %738 = vmatprep.subr.mxu0 0.0
    %739 = vmatpush1.msra.mxu0 0.0
    %740 = vmatprep.subr.mxu0 0.0
    %741 = vmatpush1.msra.mxu0 0.0
    %742 = vmatprep.subr.mxu0 0.0
    %743 = vmatpush1.msra.mxu0 0.0
    %744 = vmatprep.subr.mxu0 0.0
    %745 = vmatpush1.msra.mxu0 0.0
    %746 = vmatprep.subr.mxu0 0.0
    %747 = vmatpush1.msra.mxu0 0.0
    %748 = vmatprep.subr.mxu0 0.0
    %749 = vmatpush1.msra.mxu0 0.0
    %750 = vmatprep.subr.mxu0 0.0
    %751 = vmatpush1.msra.mxu0 0.0
    %752 = vmatprep.subr.mxu0 0.0
    %753 = vmatpush1.msra.mxu0 0.0
    %754 = vmatprep.subr.mxu0 0.0
    %755 = vmatpush1.msra.mxu0 0.0
    %756 = vmatprep.subr.mxu0 0.0
    %757 = vmatpush1.msra.mxu0 0.0
    %758 = vmatprep.mubr.f32.mxu0 0.0
    %759 = vmatmul.mubr.f32.gmra.mrb[0].mxu0 %v617
    %v760 = vpop.f32.mrb[0].mxu0
    %v761 = vadd.f32 0.0, %v760
    %v762 = vpop.f32.mrb[0].mxu0
    %v763 = vadd.f32 0.0, %v762
    %764 = vdwg.mxu0
    %765 = vmatprep.subr.mxu0 %v633
    %766 = vmatpush1.msra.mxu0 %v632
    %767 = vmatprep.subr.mxu0 %v637
    %768 = vmatpush1.msra.mxu0 %v636
    %769 = vmatprep.subr.mxu0 %v641
    %770 = vmatpush1.msra.mxu0 %v640
    %771 = vmatprep.subr.mxu0 %v645
    %772 = vmatpush1.msra.mxu0 %v644
    %773 = vmatprep.subr.mxu0 %v649
    %774 = vmatpush1.msra.mxu0 %v648
    %775 = vmatprep.subr.mxu0 %v653
    %776 = vmatpush1.msra.mxu0 %v652
    %777 = vmatprep.subr.mxu0 %v657
    %778 = vmatpush1.msra.mxu0 %v656
    %779 = vmatprep.subr.mxu0 %v661
    %780 = vmatpush1.msra.mxu0 %v660
    %781 = vmatprep.subr.mxu0 %v665
    %782 = vmatpush1.msra.mxu0 %v664
    %783 = vmatprep.subr.mxu0 %v669
    %784 = vmatpush1.msra.mxu0 %v668
    %785 = vmatprep.subr.mxu0 %v673
    %786 = vmatpush1.msra.mxu0 %v672
    %787 = vmatprep.subr.mxu0 %v677
    %788 = vmatpush1.msra.mxu0 %v676
    %789 = vmatprep.subr.mxu0 %v681
    %790 = vmatpush1.msra.mxu0 %v680
    %791 = vmatprep.subr.mxu0 %v685
    %792 = vmatpush1.msra.mxu0 %v684
    %793 = vmatprep.subr.mxu0 %v689
    %794 = vmatpush1.msra.mxu0 %v688
    %795 = vmatprep.subr.mxu0 %v693
    %796 = vmatpush1.msra.mxu0 %v692
    %797 = vmatprep.subr.mxu0 0.0
    %798 = vmatpush1.msra.mxu0 0.0
    %799 = vmatprep.subr.mxu0 0.0
    %800 = vmatpush1.msra.mxu0 0.0
    %801 = vmatprep.subr.mxu0 0.0
    %802 = vmatpush1.msra.mxu0 0.0
    %803 = vmatprep.subr.mxu0 0.0
    %804 = vmatpush1.msra.mxu0 0.0
    %805 = vmatprep.subr.mxu0 0.0
    %806 = vmatpush1.msra.mxu0 0.0
    %807 = vmatprep.subr.mxu0 0.0
    %808 = vmatpush1.msra.mxu0 0.0
    %809 = vmatprep.subr.mxu0 0.0
    %810 = vmatpush1.msra.mxu0 0.0
    %811 = vmatprep.subr.mxu0 0.0
    %812 = vmatpush1.msra.mxu0 0.0
    %813 = vmatprep.subr.mxu0 0.0
    %814 = vmatpush1.msra.mxu0 0.0
    %815 = vmatprep.subr.mxu0 0.0
    %816 = vmatpush1.msra.mxu0 0.0
    %817 = vmatprep.subr.mxu0 0.0
    %818 = vmatpush1.msra.mxu0 0.0
    %819 = vmatprep.subr.mxu0 0.0
    %820 = vmatpush1.msra.mxu0 0.0
    %821 = vmatprep.subr.mxu0 0.0
    %822 = vmatpush1.msra.mxu0 0.0
    %823 = vmatprep.subr.mxu0 0.0
    %824 = vmatpush1.msra.mxu0 0.0
    %825 = vmatprep.subr.mxu0 0.0
    %826 = vmatpush1.msra.mxu0 0.0
    %827 = vmatprep.subr.mxu0 0.0
    %828 = vmatpush1.msra.mxu0 0.0
    %829 = vmatprep.mubr.f32.mxu0 0.0
    %830 = vmatmul.mubr.f32.gmra.mrb[0].mxu0 %v617
    %v831 = vpop.f32.mrb[0].mxu0
    %v832 = vadd.f32 0.0, %v831
    %v833 = vpop.f32.mrb[0].mxu0
    %v834 = vadd.f32 0.0, %v833
    %835 = vdwg.mxu0
    %v836 = vadd.f32 %v626, %v761
    %v837 = vadd.f32 %v627, %v763
    %v838 = vadd.f32 %v628, %v832
    %v839 = vadd.f32 %v629, %v834
    %v840 = vmul.f32 %v836, 0.5
    %v841 = vtanh.pop %v840
    %v842 = vmul.f32 %v841, 0.5
    %v843 = vadd.f32 %v842, 0.5
    %v844 = vmul.f32 %v837, 0.5
    %v845 = vtanh.pop %v844
    %v846 = vmul.f32 %v845, 0.5
    %v847 = vadd.f32 %v846, 0.5
    %v848 = vtanh.pop %v838
    %v849 = vmul.f32 %v839, 0.5
    %v850 = vtanh.pop %v849
    %v851 = vmul.f32 %v850, 0.5
    %v852 = vadd.f32 %v851, 0.5
    %v853 = vmul.f32 %v847, %v615
    %v854 = vmul.f32 %v843, %v848
    %v855 = vadd.f32 %v853, %v854
    %v856 = vtanh.pop %v855
    %v857 = vmul.f32 %v852, %v856
    %s858 = scalar_lea.vmem [#allocation2], %s620
    %859 = vst [vmem:[%s858] sm:$0xff] %v857
  $region46: #{lstm_model_forward.1} parent=0 // loop_footer
    %s375 = sadd.s32 1, %s371
  $region47: #{lstm_model_forward.1} parent=0 // loop_footer_branch
    %370 = sbr.rel target = $region43
  $region48: #{lstm_model_forward.1} parent=0 // loop_exit
    _
  %860 = vst [vmem:[#allocation4] sm:$0xff] %v376
  %861 = vst [vmem:[#allocation5] sm:$0xff] %v377
  %v862 = vld [vmem:[#allocation2] sm:$0xff]
  %v863 = vld [vmem:[#allocation2 + $0x8] sm:$0xff]
  %v864 = vld [vmem:[#allocation2 + $0x10] sm:$0xff]
  %v865 = vld [vmem:[#allocation2 + $0x18] sm:$0xff]
  %v866 = vld [vmem:[#allocation2 + $0x20] sm:$0xff]
  %v867 = vld [vmem:[#allocation2 + $0x28] sm:$0xff]
  %v868 = vld [vmem:[#allocation2 + $0x30] sm:$0xff]
  %v869 = vld [vmem:[#allocation2 + $0x38] sm:$0xff]
  %v870 = vld [vmem:[%s4] sm:$0xff]
  %v871 = vld [vmem:[%s4 + $0x8] sm:$0xff]
  %v872 = vld [vmem:[%s4 + $0x10] sm:$0xff]
  %v873 = vld [vmem:[%s4 + $0x18] sm:$0xff]
  %v874 = vld [vmem:[%s4 + $0x20] sm:$0xff]
  %v875 = vld [vmem:[%s4 + $0x28] sm:$0xff]
  %v876 = vld [vmem:[%s4 + $0x30] sm:$0xff]
  %v877 = vld [vmem:[%s4 + $0x38] sm:$0xff]
  %v878 = vld [vmem:[%s4 + $0x40] sm:$0xff]
  %v879 = vld [vmem:[%s4 + $0x48] sm:$0xff]
  %v880 = vld [vmem:[%s4 + $0x50] sm:$0xff]
  %v881 = vld [vmem:[%s4 + $0x58] sm:$0xff]
  %v882 = vld [vmem:[%s4 + $0x60] sm:$0xff]
  %v883 = vld [vmem:[%s4 + $0x68] sm:$0xff]
  %v884 = vld [vmem:[%s4 + $0x70] sm:$0xff]
  %v885 = vld [vmem:[%s4 + $0x78] sm:$0xff]
  %v886 = vld [vmem:[%s4 + $0x80] sm:$0xff]
  %v887 = vld [vmem:[%s4 + $0x88] sm:$0xff]
  %v888 = vld [vmem:[%s4 + $0x90] sm:$0xff]
  %v889 = vld [vmem:[%s4 + $0x98] sm:$0xff]
  %v890 = vld [vmem:[%s4 + $0xa0] sm:$0xff]
  %v891 = vld [vmem:[%s4 + $0xa8] sm:$0xff]
  %v892 = vld [vmem:[%s4 + $0xb0] sm:$0xff]
  %v893 = vld [vmem:[%s4 + $0xb8] sm:$0xff]
  %v894 = vld [vmem:[%s4 + $0xc0] sm:$0xff]
  %v895 = vld [vmem:[%s4 + $0xc8] sm:$0xff]
  %v896 = vld [vmem:[%s4 + $0xd0] sm:$0xff]
  %v897 = vld [vmem:[%s4 + $0xd8] sm:$0xff]
  %v898 = vld [vmem:[%s4 + $0xe0] sm:$0xff]
  %v899 = vld [vmem:[%s4 + $0xe8] sm:$0xff]
  %v900 = vld [vmem:[%s4 + $0xf0] sm:$0xff]
  %v901 = vld [vmem:[%s4 + $0xf8] sm:$0xff]
  %v902 = vld [vmem:[%s4 + $0x100] sm:$0xff]
  %v903 = vld [vmem:[%s4 + $0x108] sm:$0xff]
  %v904 = vld [vmem:[%s4 + $0x110] sm:$0xff]
  %v905 = vld [vmem:[%s4 + $0x118] sm:$0xff]
  %v906 = vld [vmem:[%s4 + $0x120] sm:$0xff]
  %v907 = vld [vmem:[%s4 + $0x128] sm:$0xff]
  %v908 = vld [vmem:[%s4 + $0x130] sm:$0xff]
  %v909 = vld [vmem:[%s4 + $0x138] sm:$0xff]
  %v910 = vld [vmem:[%s4 + $0x140] sm:$0xff]
  %v911 = vld [vmem:[%s4 + $0x148] sm:$0xff]
  %v912 = vld [vmem:[%s4 + $0x150] sm:$0xff]
  %v913 = vld [vmem:[%s4 + $0x158] sm:$0xff]
  %v914 = vld [vmem:[%s4 + $0x160] sm:$0xff]
  %v915 = vld [vmem:[%s4 + $0x168] sm:$0xff]
  %v916 = vld [vmem:[%s4 + $0x170] sm:$0xff]
  %v917 = vld [vmem:[%s4 + $0x178] sm:$0xff]
  %v918 = vld [vmem:[%s4 + $0x180] sm:$0xff]
  %v919 = vld [vmem:[%s4 + $0x188] sm:$0xff]
  %v920 = vld [vmem:[%s4 + $0x190] sm:$0xff]
  %v921 = vld [vmem:[%s4 + $0x198] sm:$0xff]
  %v922 = vld [vmem:[%s4 + $0x1a0] sm:$0xff]
  %v923 = vld [vmem:[%s4 + $0x1a8] sm:$0xff]
  %v924 = vld [vmem:[%s4 + $0x1b0] sm:$0xff]
  %v925 = vld [vmem:[%s4 + $0x1b8] sm:$0xff]
  %v926 = vld [vmem:[%s4 + $0x1c0] sm:$0xff]
  %v927 = vld [vmem:[%s4 + $0x1c8] sm:$0xff]
  %v928 = vld [vmem:[%s4 + $0x1d0] sm:$0xff]
  %v929 = vld [vmem:[%s4 + $0x1d8] sm:$0xff]
  %v930 = vld [vmem:[%s4 + $0x1e0] sm:$0xff]
  %v931 = vld [vmem:[%s4 + $0x1e8] sm:$0xff]
  %v932 = vld [vmem:[%s4 + $0x1f0] sm:$0xff]
  %v933 = vld [vmem:[%s4 + $0x1f8] sm:$0xff]
  %v934 = vld [vmem:[%s6] sm:$0xf]
  %v936 = vlaneseq
  %v937 = vshrl.u32 %v936, 7
  %v938 = vsub.s32 0, %v937
  %v939 = vrot.slane %v934, %v938
  %v940 = vlaneseq
  %v941 = vshrl.u32 %v940, 7
  %v942 = vsub.s32 1, %v941
  %v943 = vrot.slane %v934, %v942
  %v944 = vlaneseq
  %v945 = vshrl.u32 %v944, 7
  %v946 = vsub.s32 2, %v945
  %v947 = vrot.slane %v934, %v946
  %v948 = vlaneseq
  %v949 = vshrl.u32 %v948, 7
  %v950 = vsub.s32 3, %v949
  %v951 = vrot.slane %v934, %v950
  %956 = vmatprep.subr.mxu0 %v871
  %957 = vmatpush1.msra.mxu0 %v870
  %958 = vmatprep.subr.mxu0 %v875
  %959 = vmatpush1.msra.mxu0 %v874
  %960 = vmatprep.subr.mxu0 %v879
  %961 = vmatpush1.msra.mxu0 %v878
  %962 = vmatprep.subr.mxu0 %v883
  %963 = vmatpush1.msra.mxu0 %v882
  %964 = vmatprep.subr.mxu0 %v887
  %965 = vmatpush1.msra.mxu0 %v886
  %966 = vmatprep.subr.mxu0 %v891
  %967 = vmatpush1.msra.mxu0 %v890
  %968 = vmatprep.subr.mxu0 %v895
  %969 = vmatpush1.msra.mxu0 %v894
  %970 = vmatprep.subr.mxu0 %v899
  %971 = vmatpush1.msra.mxu0 %v898
  %972 = vmatprep.subr.mxu0 %v903
  %973 = vmatpush1.msra.mxu0 %v902
  %974 = vmatprep.subr.mxu0 %v907
  %975 = vmatpush1.msra.mxu0 %v906
  %976 = vmatprep.subr.mxu0 %v911
  %977 = vmatpush1.msra.mxu0 %v910
  %978 = vmatprep.subr.mxu0 %v915
  %979 = vmatpush1.msra.mxu0 %v914
  %980 = vmatprep.subr.mxu0 %v919
  %981 = vmatpush1.msra.mxu0 %v918
  %982 = vmatprep.subr.mxu0 %v923
  %983 = vmatpush1.msra.mxu0 %v922
  %984 = vmatprep.subr.mxu0 %v927
  %985 = vmatpush1.msra.mxu0 %v926
  %986 = vmatprep.subr.mxu0 %v931
  %987 = vmatpush1.msra.mxu0 %v930
  %988 = vmatprep.subr.mxu0 0.0
  %989 = vmatpush1.msra.mxu0 0.0
  %990 = vmatprep.subr.mxu0 0.0
  %991 = vmatpush1.msra.mxu0 0.0
  %992 = vmatprep.subr.mxu0 0.0
  %993 = vmatpush1.msra.mxu0 0.0
  %994 = vmatprep.subr.mxu0 0.0
  %995 = vmatpush1.msra.mxu0 0.0
  %996 = vmatprep.subr.mxu0 0.0
  %997 = vmatpush1.msra.mxu0 0.0
  %998 = vmatprep.subr.mxu0 0.0
  %999 = vmatpush1.msra.mxu0 0.0
  %1000 = vmatprep.subr.mxu0 0.0
  %1001 = vmatpush1.msra.mxu0 0.0
  %1002 = vmatprep.subr.mxu0 0.0
  %1003 = vmatpush1.msra.mxu0 0.0
  %1004 = vmatprep.subr.mxu0 0.0
  %1005 = vmatpush1.msra.mxu0 0.0
  %1006 = vmatprep.subr.mxu0 0.0
  %1007 = vmatpush1.msra.mxu0 0.0
  %1008 = vmatprep.subr.mxu0 0.0
  %1009 = vmatpush1.msra.mxu0 0.0
  %1010 = vmatprep.subr.mxu0 0.0
  %1011 = vmatpush1.msra.mxu0 0.0
  %1012 = vmatprep.subr.mxu0 0.0
  %1013 = vmatpush1.msra.mxu0 0.0
  %1014 = vmatprep.subr.mxu0 0.0
  %1015 = vmatpush1.msra.mxu0 0.0
  %1016 = vmatprep.subr.mxu0 0.0
  %1017 = vmatpush1.msra.mxu0 0.0
  %1018 = vmatprep.subr.mxu0 0.0
  %1019 = vmatpush1.msra.mxu0 0.0
  %1020 = vmatprep.mubr.f32.mxu0 0.0
  %1021 = vmatmul.mubr.f32.gmra.mrb[0].mxu0 %v862
  %v1022 = vpop.f32.mrb[0].mxu0
  %v1023 = vadd.f32 %v939, %v1022
  %v1024 = vpop.f32.mrb[0].mxu0
  %v1025 = vadd.f32 %v943, %v1024
  %1026 = vmatprep.mubr.f32.mxu0 0.0
  %1027 = vmatmul.mubr.f32.gmra.mrb[0].mxu0 %v863
  %v1028 = vpop.f32.mrb[0].mxu0
  %v1029 = vadd.f32 %v939, %v1028
  %v1030 = vpop.f32.mrb[0].mxu0
  %v1031 = vadd.f32 %v943, %v1030
  %1032 = vmatprep.mubr.f32.mxu0 0.0
  %1033 = vmatmul.mubr.f32.gmra.mrb[0].mxu0 %v864
  %v1034 = vpop.f32.mrb[0].mxu0
  %v1035 = vadd.f32 %v939, %v1034
  %v1036 = vpop.f32.mrb[0].mxu0
  %v1037 = vadd.f32 %v943, %v1036
  %1038 = vmatprep.mubr.f32.mxu0 0.0
  %1039 = vmatmul.mubr.f32.gmra.mrb[0].mxu0 %v865
  %v1040 = vpop.f32.mrb[0].mxu0
  %v1041 = vadd.f32 %v939, %v1040
  %v1042 = vpop.f32.mrb[0].mxu0
  %v1043 = vadd.f32 %v943, %v1042
  %1044 = vmatprep.mubr.f32.mxu0 0.0
  %1045 = vmatmul.mubr.f32.gmra.mrb[0].mxu0 %v866
  %v1046 = vpop.f32.mrb[0].mxu0
  %v1047 = vadd.f32 %v939, %v1046
  %v1048 = vpop.f32.mrb[0].mxu0
  %v1049 = vadd.f32 %v943, %v1048
  %1050 = vmatprep.mubr.f32.mxu0 0.0
  %1051 = vmatmul.mubr.f32.gmra.mrb[0].mxu0 %v867
  %v1052 = vpop.f32.mrb[0].mxu0
  %v1053 = vadd.f32 %v939, %v1052
  %v1054 = vpop.f32.mrb[0].mxu0
  %v1055 = vadd.f32 %v943, %v1054
  %1056 = vmatprep.mubr.f32.mxu0 0.0
  %1057 = vmatmul.mubr.f32.gmra.mrb[0].mxu0 %v868
  %v1058 = vpop.f32.mrb[0].mxu0
  %v1059 = vadd.f32 %v939, %v1058
  %v1060 = vpop.f32.mrb[0].mxu0
  %v1061 = vadd.f32 %v943, %v1060
  %1062 = vmatprep.mubr.f32.mxu0 0.0
  %1063 = vmatmul.mubr.f32.gmra.mrb[0].mxu0 %v869
  %v1064 = vpop.f32.mrb[0].mxu0
  %v1065 = vadd.f32 %v939, %v1064
  %v1066 = vpop.f32.mrb[0].mxu0
  %v1067 = vadd.f32 %v943, %v1066
  %1068 = vdwg.mxu0
  %1069 = vmatprep.subr.mxu0 %v873
  %1070 = vmatpush1.msra.mxu0 %v872
  %1071 = vmatprep.subr.mxu0 %v877
  %1072 = vmatpush1.msra.mxu0 %v876
  %1073 = vmatprep.subr.mxu0 %v881
  %1074 = vmatpush1.msra.mxu0 %v880
  %1075 = vmatprep.subr.mxu0 %v885
  %1076 = vmatpush1.msra.mxu0 %v884
  %1077 = vmatprep.subr.mxu0 %v889
  %1078 = vmatpush1.msra.mxu0 %v888
  %1079 = vmatprep.subr.mxu0 %v893
  %1080 = vmatpush1.msra.mxu0 %v892
  %1081 = vmatprep.subr.mxu0 %v897
  %1082 = vmatpush1.msra.mxu0 %v896
  %1083 = vmatprep.subr.mxu0 %v901
  %1084 = vmatpush1.msra.mxu0 %v900
  %1085 = vmatprep.subr.mxu0 %v905
  %1086 = vmatpush1.msra.mxu0 %v904
  %1087 = vmatprep.subr.mxu0 %v909
  %1088 = vmatpush1.msra.mxu0 %v908
  %1089 = vmatprep.subr.mxu0 %v913
  %1090 = vmatpush1.msra.mxu0 %v912
  %1091 = vmatprep.subr.mxu0 %v917
  %1092 = vmatpush1.msra.mxu0 %v916
  %1093 = vmatprep.subr.mxu0 %v921
  %1094 = vmatpush1.msra.mxu0 %v920
  %1095 = vmatprep.subr.mxu0 %v925
  %1096 = vmatpush1.msra.mxu0 %v924
  %1097 = vmatprep.subr.mxu0 %v929
  %1098 = vmatpush1.msra.mxu0 %v928
  %1099 = vmatprep.subr.mxu0 %v933
  %1100 = vmatpush1.msra.mxu0 %v932
  %1101 = vmatprep.subr.mxu0 0.0
  %1102 = vmatpush1.msra.mxu0 0.0
  %1103 = vmatprep.subr.mxu0 0.0
  %1104 = vmatpush1.msra.mxu0 0.0
  %1105 = vmatprep.subr.mxu0 0.0
  %1106 = vmatpush1.msra.mxu0 0.0
  %1107 = vmatprep.subr.mxu0 0.0
  %1108 = vmatpush1.msra.mxu0 0.0
  %1109 = vmatprep.subr.mxu0 0.0
  %1110 = vmatpush1.msra.mxu0 0.0
  %1111 = vmatprep.subr.mxu0 0.0
  %1112 = vmatpush1.msra.mxu0 0.0
  %1113 = vmatprep.subr.mxu0 0.0
  %1114 = vmatpush1.msra.mxu0 0.0
  %1115 = vmatprep.subr.mxu0 0.0
  %1116 = vmatpush1.msra.mxu0 0.0
  %1117 = vmatprep.subr.mxu0 0.0
  %1118 = vmatpush1.msra.mxu0 0.0
  %1119 = vmatprep.subr.mxu0 0.0
  %1120 = vmatpush1.msra.mxu0 0.0
  %1121 = vmatprep.subr.mxu0 0.0
  %1122 = vmatpush1.msra.mxu0 0.0
  %1123 = vmatprep.subr.mxu0 0.0
  %1124 = vmatpush1.msra.mxu0 0.0
  %1125 = vmatprep.subr.mxu0 0.0
  %1126 = vmatpush1.msra.mxu0 0.0
  %1127 = vmatprep.subr.mxu0 0.0
  %1128 = vmatpush1.msra.mxu0 0.0
  %1129 = vmatprep.subr.mxu0 0.0
  %1130 = vmatpush1.msra.mxu0 0.0
  %1131 = vmatprep.subr.mxu0 0.0
  %1132 = vmatpush1.msra.mxu0 0.0
  %1133 = vmatprep.mubr.f32.mxu0 0.0
  %1134 = vmatmul.mubr.f32.gmra.mrb[0].mxu0 %v862
  %v1135 = vpop.f32.mrb[0].mxu0
  %v1136 = vadd.f32 %v947, %v1135
  %v1137 = vpop.f32.mrb[0].mxu0
  %v1138 = vadd.f32 %v951, %v1137
  %1139 = vmatprep.mubr.f32.mxu0 0.0
  %1140 = vmatmul.mubr.f32.gmra.mrb[0].mxu0 %v863
  %v1141 = vpop.f32.mrb[0].mxu0
  %v1142 = vadd.f32 %v947, %v1141
  %v1143 = vpop.f32.mrb[0].mxu0
  %v1144 = vadd.f32 %v951, %v1143
  %1145 = vmatprep.mubr.f32.mxu0 0.0
  %1146 = vmatmul.mubr.f32.gmra.mrb[0].mxu0 %v864
  %v1147 = vpop.f32.mrb[0].mxu0
  %v1148 = vadd.f32 %v947, %v1147
  %v1149 = vpop.f32.mrb[0].mxu0
  %v1150 = vadd.f32 %v951, %v1149
  %1151 = vmatprep.mubr.f32.mxu0 0.0
  %1152 = vmatmul.mubr.f32.gmra.mrb[0].mxu0 %v865
  %v1153 = vpop.f32.mrb[0].mxu0
  %v1154 = vadd.f32 %v947, %v1153
  %v1155 = vpop.f32.mrb[0].mxu0
  %v1156 = vadd.f32 %v951, %v1155
  %1157 = vmatprep.mubr.f32.mxu0 0.0
  %1158 = vmatmul.mubr.f32.gmra.mrb[0].mxu0 %v866
  %v1159 = vpop.f32.mrb[0].mxu0
  %v1160 = vadd.f32 %v947, %v1159
  %v1161 = vpop.f32.mrb[0].mxu0
  %v1162 = vadd.f32 %v951, %v1161
  %1163 = vmatprep.mubr.f32.mxu0 0.0
  %1164 = vmatmul.mubr.f32.gmra.mrb[0].mxu0 %v867
  %v1165 = vpop.f32.mrb[0].mxu0
  %v1166 = vadd.f32 %v947, %v1165
  %v1167 = vpop.f32.mrb[0].mxu0
  %v1168 = vadd.f32 %v951, %v1167
  %1169 = vmatprep.mubr.f32.mxu0 0.0
  %1170 = vmatmul.mubr.f32.gmra.mrb[0].mxu0 %v868
  %v1171 = vpop.f32.mrb[0].mxu0
  %v1172 = vadd.f32 %v947, %v1171
  %v1173 = vpop.f32.mrb[0].mxu0
  %v1174 = vadd.f32 %v951, %v1173
  %1175 = vmatprep.mubr.f32.mxu0 0.0
  %1176 = vmatmul.mubr.f32.gmra.mrb[0].mxu0 %v869
  %v1177 = vpop.f32.mrb[0].mxu0
  %v1178 = vadd.f32 %v947, %v1177
  %v1179 = vpop.f32.mrb[0].mxu0
  %v1180 = vadd.f32 %v951, %v1179
  %1181 = vdwg.mxu0
  %1182 = vst [vmem:[#allocation3] sm:$0xff] %v1023
  %1183 = vst [vmem:[#allocation3 + $0x8] sm:$0xff] %v1025
  %1184 = vst [vmem:[#allocation3 + $0x10] sm:$0xff] %v1136
  %1185 = vst [vmem:[#allocation3 + $0x18] sm:$0xff] %v1138
  %1186 = vst [vmem:[#allocation3 + $0x20] sm:$0xff] %v1029
  %1187 = vst [vmem:[#allocation3 + $0x28] sm:$0xff] %v1031
  %1188 = vst [vmem:[#allocation3 + $0x30] sm:$0xff] %v1142
  %1189 = vst [vmem:[#allocation3 + $0x38] sm:$0xff] %v1144
  %1190 = vst [vmem:[#allocation3 + $0x40] sm:$0xff] %v1035
  %1191 = vst [vmem:[#allocation3 + $0x48] sm:$0xff] %v1037
  %1192 = vst [vmem:[#allocation3 + $0x50] sm:$0xff] %v1148
  %1193 = vst [vmem:[#allocation3 + $0x58] sm:$0xff] %v1150
  %1194 = vst [vmem:[#allocation3 + $0x60] sm:$0xff] %v1041
  %1195 = vst [vmem:[#allocation3 + $0x68] sm:$0xff] %v1043
  %1196 = vst [vmem:[#allocation3 + $0x70] sm:$0xff] %v1154
  %1197 = vst [vmem:[#allocation3 + $0x78] sm:$0xff] %v1156
  %1198 = vst [vmem:[#allocation3 + $0x80] sm:$0xff] %v1047
  %1199 = vst [vmem:[#allocation3 + $0x88] sm:$0xff] %v1049
  %1200 = vst [vmem:[#allocation3 + $0x90] sm:$0xff] %v1160
  %1201 = vst [vmem:[#allocation3 + $0x98] sm:$0xff] %v1162
  %1202 = vst [vmem:[#allocation3 + $0xa0] sm:$0xff] %v1053
  %1203 = vst [vmem:[#allocation3 + $0xa8] sm:$0xff] %v1055
  %1204 = vst [vmem:[#allocation3 + $0xb0] sm:$0xff] %v1166
  %1205 = vst [vmem:[#allocation3 + $0xb8] sm:$0xff] %v1168
  %1206 = vst [vmem:[#allocation3 + $0xc0] sm:$0xff] %v1059
  %1207 = vst [vmem:[#allocation3 + $0xc8] sm:$0xff] %v1061
  %1208 = vst [vmem:[#allocation3 + $0xd0] sm:$0xff] %v1172
  %1209 = vst [vmem:[#allocation3 + $0xd8] sm:$0xff] %v1174
  %1210 = vst [vmem:[#allocation3 + $0xe0] sm:$0xff] %v1065
  %1211 = vst [vmem:[#allocation3 + $0xe8] sm:$0xff] %v1067
  %1212 = vst [vmem:[#allocation3 + $0xf0] sm:$0xff] %v1178
  %1213 = vst [vmem:[#allocation3 + $0xf8] sm:$0xff] %v1180
  %s1214 = scalar_lea.vmem [#allocation4], 8
  %v1215 = vld [vmem:[%s1214] sm:$0xff]
  %s1216 = scalar_lea.vmem [#allocation5], 8
  %v1217 = vld [vmem:[%s1216] sm:$0xff]
  loop: start=0, step=1, limit=4
  $region49: #{lstm_model_forward.1} parent=0 // loop_pre_header
    _
  $region50: #{lstm_model_forward.1} parent=0 // loop_header
    %s1219 = sphi 0, %s1223
    %p1220 = scmp.ge.s32.totalorder %s1219, 4
    %v1224 = vphi %v1215, %v1639
    %v1225 = vphi %v1217, %v1637
  $region51: #{lstm_model_forward.1} parent=0 // loop_header_branch
    %1222 = sbr.rel (%p1220) target = $region55
  $region52: #{lstm_model_forward.1} parent=0 // loop_body
    %s1226 = smul.u32 %s1219, 2
    %s1227 = sadd.s32 %s1226, 1
    %s1228 = smul.u32 %s1219, 16
    %s1229 = sshra.s32 %s1228, 3
    %s1230 = sand.u32 %s1228, 7
    %s1231 = smul.u32 %s1229, 4
    %s1232 = smul.addr %s1231, 8
    %s1233 = scalar_lea.vmem [#allocation3], %s1232
    %v1234 = vld [vmem:[%s1233] sm:$0xff]
    %v1235 = vld [vmem:[%s1233 + $0x8] sm:$0xff]
    %v1236 = vld [vmem:[%s1233 + $0x10] sm:$0xff]
    %v1237 = vld [vmem:[%s1233 + $0x18] sm:$0xff]
    %v1238 = vld [vmem:[%s5] sm:$0xff]
    %v1239 = vld [vmem:[%s5 + $0x8] sm:$0xff]
    %v1240 = vld [vmem:[%s5 + $0x10] sm:$0xff]
    %v1241 = vld [vmem:[%s5 + $0x18] sm:$0xff]
    %v1242 = vld [vmem:[%s5 + $0x20] sm:$0xff]
    %v1243 = vld [vmem:[%s5 + $0x28] sm:$0xff]
    %v1244 = vld [vmem:[%s5 + $0x30] sm:$0xff]
    %v1245 = vld [vmem:[%s5 + $0x38] sm:$0xff]
    %v1246 = vld [vmem:[%s5 + $0x40] sm:$0xff]
    %v1247 = vld [vmem:[%s5 + $0x48] sm:$0xff]
    %v1248 = vld [vmem:[%s5 + $0x50] sm:$0xff]
    %v1249 = vld [vmem:[%s5 + $0x58] sm:$0xff]
    %v1250 = vld [vmem:[%s5 + $0x60] sm:$0xff]
    %v1251 = vld [vmem:[%s5 + $0x68] sm:$0xff]
    %v1252 = vld [vmem:[%s5 + $0x70] sm:$0xff]
    %v1253 = vld [vmem:[%s5 + $0x78] sm:$0xff]
    %v1254 = vld [vmem:[%s5 + $0x80] sm:$0xff]
    %v1255 = vld [vmem:[%s5 + $0x88] sm:$0xff]
    %v1256 = vld [vmem:[%s5 + $0x90] sm:$0xff]
    %v1257 = vld [vmem:[%s5 + $0x98] sm:$0xff]
    %v1258 = vld [vmem:[%s5 + $0xa0] sm:$0xff]
    %v1259 = vld [vmem:[%s5 + $0xa8] sm:$0xff]
    %v1260 = vld [vmem:[%s5 + $0xb0] sm:$0xff]
    %v1261 = vld [vmem:[%s5 + $0xb8] sm:$0xff]
    %v1262 = vld [vmem:[%s5 + $0xc0] sm:$0xff]
    %v1263 = vld [vmem:[%s5 + $0xc8] sm:$0xff]
    %v1264 = vld [vmem:[%s5 + $0xd0] sm:$0xff]
    %v1265 = vld [vmem:[%s5 + $0xd8] sm:$0xff]
    %v1266 = vld [vmem:[%s5 + $0xe0] sm:$0xff]
    %v1267 = vld [vmem:[%s5 + $0xe8] sm:$0xff]
    %v1268 = vld [vmem:[%s5 + $0xf0] sm:$0xff]
    %v1269 = vld [vmem:[%s5 + $0xf8] sm:$0xff]
    %v1270 = vld [vmem:[%s5 + $0x100] sm:$0xff]
    %v1271 = vld [vmem:[%s5 + $0x108] sm:$0xff]
    %v1272 = vld [vmem:[%s5 + $0x110] sm:$0xff]
    %v1273 = vld [vmem:[%s5 + $0x118] sm:$0xff]
    %v1274 = vld [vmem:[%s5 + $0x120] sm:$0xff]
    %v1275 = vld [vmem:[%s5 + $0x128] sm:$0xff]
    %v1276 = vld [vmem:[%s5 + $0x130] sm:$0xff]
    %v1277 = vld [vmem:[%s5 + $0x138] sm:$0xff]
    %v1278 = vld [vmem:[%s5 + $0x140] sm:$0xff]
    %v1279 = vld [vmem:[%s5 + $0x148] sm:$0xff]
    %v1280 = vld [vmem:[%s5 + $0x150] sm:$0xff]
    %v1281 = vld [vmem:[%s5 + $0x158] sm:$0xff]
    %v1282 = vld [vmem:[%s5 + $0x160] sm:$0xff]
    %v1283 = vld [vmem:[%s5 + $0x168] sm:$0xff]
    %v1284 = vld [vmem:[%s5 + $0x170] sm:$0xff]
    %v1285 = vld [vmem:[%s5 + $0x178] sm:$0xff]
    %v1286 = vld [vmem:[%s5 + $0x180] sm:$0xff]
    %v1287 = vld [vmem:[%s5 + $0x188] sm:$0xff]
    %v1288 = vld [vmem:[%s5 + $0x190] sm:$0xff]
    %v1289 = vld [vmem:[%s5 + $0x198] sm:$0xff]
    %v1290 = vld [vmem:[%s5 + $0x1a0] sm:$0xff]
    %v1291 = vld [vmem:[%s5 + $0x1a8] sm:$0xff]
    %v1292 = vld [vmem:[%s5 + $0x1b0] sm:$0xff]
    %v1293 = vld [vmem:[%s5 + $0x1b8] sm:$0xff]
    %v1294 = vld [vmem:[%s5 + $0x1c0] sm:$0xff]
    %v1295 = vld [vmem:[%s5 + $0x1c8] sm:$0xff]
    %v1296 = vld [vmem:[%s5 + $0x1d0] sm:$0xff]
    %v1297 = vld [vmem:[%s5 + $0x1d8] sm:$0xff]
    %v1298 = vld [vmem:[%s5 + $0x1e0] sm:$0xff]
    %v1299 = vld [vmem:[%s5 + $0x1e8] sm:$0xff]
    %v1300 = vld [vmem:[%s5 + $0x1f0] sm:$0xff]
    %v1301 = vld [vmem:[%s5 + $0x1f8] sm:$0xff]
    %1302 = vmatprep.subr.mxu0 %v1239
    %1303 = vmatpush1.msra.mxu0 %v1238
    %1304 = vmatprep.subr.mxu0 %v1243
    %1305 = vmatpush1.msra.mxu0 %v1242
    %1306 = vmatprep.subr.mxu0 %v1247
    %1307 = vmatpush1.msra.mxu0 %v1246
    %1308 = vmatprep.subr.mxu0 %v1251
    %1309 = vmatpush1.msra.mxu0 %v1250
    %1310 = vmatprep.subr.mxu0 %v1255
    %1311 = vmatpush1.msra.mxu0 %v1254
    %1312 = vmatprep.subr.mxu0 %v1259
    %1313 = vmatpush1.msra.mxu0 %v1258
    %1314 = vmatprep.subr.mxu0 %v1263
    %1315 = vmatpush1.msra.mxu0 %v1262
    %1316 = vmatprep.subr.mxu0 %v1267
    %1317 = vmatpush1.msra.mxu0 %v1266
    %1318 = vmatprep.subr.mxu0 %v1271
    %1319 = vmatpush1.msra.mxu0 %v1270
    %1320 = vmatprep.subr.mxu0 %v1275
    %1321 = vmatpush1.msra.mxu0 %v1274
    %1322 = vmatprep.subr.mxu0 %v1279
    %1323 = vmatpush1.msra.mxu0 %v1278
    %1324 = vmatprep.subr.mxu0 %v1283
    %1325 = vmatpush1.msra.mxu0 %v1282
    %1326 = vmatprep.subr.mxu0 %v1287
    %1327 = vmatpush1.msra.mxu0 %v1286
    %1328 = vmatprep.subr.mxu0 %v1291
    %1329 = vmatpush1.msra.mxu0 %v1290
    %1330 = vmatprep.subr.mxu0 %v1295
    %1331 = vmatpush1.msra.mxu0 %v1294
    %1332 = vmatprep.subr.mxu0 %v1299
    %1333 = vmatpush1.msra.mxu0 %v1298
    %1334 = vmatprep.subr.mxu0 0.0
    %1335 = vmatpush1.msra.mxu0 0.0
    %1336 = vmatprep.subr.mxu0 0.0
    %1337 = vmatpush1.msra.mxu0 0.0
    %1338 = vmatprep.subr.mxu0 0.0
    %1339 = vmatpush1.msra.mxu0 0.0
    %1340 = vmatprep.subr.mxu0 0.0
    %1341 = vmatpush1.msra.mxu0 0.0
    %1342 = vmatprep.subr.mxu0 0.0
    %1343 = vmatpush1.msra.mxu0 0.0
    %1344 = vmatprep.subr.mxu0 0.0
    %1345 = vmatpush1.msra.mxu0 0.0
    %1346 = vmatprep.subr.mxu0 0.0
    %1347 = vmatpush1.msra.mxu0 0.0
    %1348 = vmatprep.subr.mxu0 0.0
    %1349 = vmatpush1.msra.mxu0 0.0
    %1350 = vmatprep.subr.mxu0 0.0
    %1351 = vmatpush1.msra.mxu0 0.0
    %1352 = vmatprep.subr.mxu0 0.0
    %1353 = vmatpush1.msra.mxu0 0.0
    %1354 = vmatprep.subr.mxu0 0.0
    %1355 = vmatpush1.msra.mxu0 0.0
    %1356 = vmatprep.subr.mxu0 0.0
    %1357 = vmatpush1.msra.mxu0 0.0
    %1358 = vmatprep.subr.mxu0 0.0
    %1359 = vmatpush1.msra.mxu0 0.0
    %1360 = vmatprep.subr.mxu0 0.0
    %1361 = vmatpush1.msra.mxu0 0.0
    %1362 = vmatprep.subr.mxu0 0.0
    %1363 = vmatpush1.msra.mxu0 0.0
    %1364 = vmatprep.subr.mxu0 0.0
    %1365 = vmatpush1.msra.mxu0 0.0
    %1366 = vmatprep.mubr.f32.mxu0 0.0
    %1367 = vmatmul.mubr.f32.gmra.mrb[0].mxu0 %v1224
    %v1368 = vpop.f32.mrb[0].mxu0
    %v1369 = vadd.f32 0.0, %v1368
    %v1370 = vpop.f32.mrb[0].mxu0
    %v1371 = vadd.f32 0.0, %v1370
    %1372 = vdwg.mxu0
    %1373 = vmatprep.subr.mxu0 %v1241
    %1374 = vmatpush1.msra.mxu0 %v1240
    %1375 = vmatprep.subr.mxu0 %v1245
    %1376 = vmatpush1.msra.mxu0 %v1244
    %1377 = vmatprep.subr.mxu0 %v1249
    %1378 = vmatpush1.msra.mxu0 %v1248
    %1379 = vmatprep.subr.mxu0 %v1253
    %1380 = vmatpush1.msra.mxu0 %v1252
    %1381 = vmatprep.subr.mxu0 %v1257
    %1382 = vmatpush1.msra.mxu0 %v1256
    %1383 = vmatprep.subr.mxu0 %v1261
    %1384 = vmatpush1.msra.mxu0 %v1260
    %1385 = vmatprep.subr.mxu0 %v1265
    %1386 = vmatpush1.msra.mxu0 %v1264
    %1387 = vmatprep.subr.mxu0 %v1269
    %1388 = vmatpush1.msra.mxu0 %v1268
    %1389 = vmatprep.subr.mxu0 %v1273
    %1390 = vmatpush1.msra.mxu0 %v1272
    %1391 = vmatprep.subr.mxu0 %v1277
    %1392 = vmatpush1.msra.mxu0 %v1276
    %1393 = vmatprep.subr.mxu0 %v1281
    %1394 = vmatpush1.msra.mxu0 %v1280
    %1395 = vmatprep.subr.mxu0 %v1285
    %1396 = vmatpush1.msra.mxu0 %v1284
    %1397 = vmatprep.subr.mxu0 %v1289
    %1398 = vmatpush1.msra.mxu0 %v1288
    %1399 = vmatprep.subr.mxu0 %v1293
    %1400 = vmatpush1.msra.mxu0 %v1292
    %1401 = vmatprep.subr.mxu0 %v1297
    %1402 = vmatpush1.msra.mxu0 %v1296
    %1403 = vmatprep.subr.mxu0 %v1301
    %1404 = vmatpush1.msra.mxu0 %v1300
    %1405 = vmatprep.subr.mxu0 0.0
    %1406 = vmatpush1.msra.mxu0 0.0
    %1407 = vmatprep.subr.mxu0 0.0
    %1408 = vmatpush1.msra.mxu0 0.0
    %1409 = vmatprep.subr.mxu0 0.0
    %1410 = vmatpush1.msra.mxu0 0.0
    %1411 = vmatprep.subr.mxu0 0.0
    %1412 = vmatpush1.msra.mxu0 0.0
    %1413 = vmatprep.subr.mxu0 0.0
    %1414 = vmatpush1.msra.mxu0 0.0
    %1415 = vmatprep.subr.mxu0 0.0
    %1416 = vmatpush1.msra.mxu0 0.0
    %1417 = vmatprep.subr.mxu0 0.0
    %1418 = vmatpush1.msra.mxu0 0.0
    %1419 = vmatprep.subr.mxu0 0.0
    %1420 = vmatpush1.msra.mxu0 0.0
    %1421 = vmatprep.subr.mxu0 0.0
    %1422 = vmatpush1.msra.mxu0 0.0
    %1423 = vmatprep.subr.mxu0 0.0
    %1424 = vmatpush1.msra.mxu0 0.0
    %1425 = vmatprep.subr.mxu0 0.0
    %1426 = vmatpush1.msra.mxu0 0.0
    %1427 = vmatprep.subr.mxu0 0.0
    %1428 = vmatpush1.msra.mxu0 0.0
    %1429 = vmatprep.subr.mxu0 0.0
    %1430 = vmatpush1.msra.mxu0 0.0
    %1431 = vmatprep.subr.mxu0 0.0
    %1432 = vmatpush1.msra.mxu0 0.0
    %1433 = vmatprep.subr.mxu0 0.0
    %1434 = vmatpush1.msra.mxu0 0.0
    %1435 = vmatprep.subr.mxu0 0.0
    %1436 = vmatpush1.msra.mxu0 0.0
    %1437 = vmatprep.mubr.f32.mxu0 0.0
    %1438 = vmatmul.mubr.f32.gmra.mrb[0].mxu0 %v1224
    %v1439 = vpop.f32.mrb[0].mxu0
    %v1440 = vadd.f32 0.0, %v1439
    %v1441 = vpop.f32.mrb[0].mxu0
    %v1442 = vadd.f32 0.0, %v1441
    %1443 = vdwg.mxu0
    %v1444 = vadd.f32 %v1234, %v1369
    %v1445 = vadd.f32 %v1235, %v1371
    %v1446 = vadd.f32 %v1236, %v1440
    %v1447 = vadd.f32 %v1237, %v1442
    %v1448 = vmul.f32 %v1444, 0.5
    %v1449 = vtanh.pop %v1448
    %v1450 = vmul.f32 %v1449, 0.5
    %v1451 = vadd.f32 %v1450, 0.5
    %v1452 = vmul.f32 %v1445, 0.5
    %v1453 = vtanh.pop %v1452
    %v1454 = vmul.f32 %v1453, 0.5
    %v1455 = vadd.f32 %v1454, 0.5
    %v1456 = vtanh.pop %v1446
    %v1457 = vmul.f32 %v1447, 0.5
    %v1458 = vtanh.pop %v1457
    %v1459 = vmul.f32 %v1458, 0.5
    %v1460 = vadd.f32 %v1459, 0.5
    %v1461 = vmul.f32 %v1455, %v1225
    %v1462 = vmul.f32 %v1451, %v1456
    %v1463 = vadd.f32 %v1461, %v1462
    %v1464 = vtanh.pop %v1463
    %v1465 = vmul.f32 %v1460, %v1464
    %s1466 = smul.u32 %s1227, 8
    %s1467 = sshra.s32 %s1466, 3
    %s1468 = sand.u32 %s1466, 7
    %s1469 = smul.u32 %s1467, 4
    %s1470 = smul.addr %s1469, 8
    %s1471 = scalar_lea.vmem [#allocation3], %s1470
    %v1472 = vld [vmem:[%s1471] sm:$0xff]
    %v1473 = vld [vmem:[%s1471 + $0x8] sm:$0xff]
    %v1474 = vld [vmem:[%s1471 + $0x10] sm:$0xff]
    %v1475 = vld [vmem:[%s1471 + $0x18] sm:$0xff]
    %1476 = vmatprep.subr.mxu0 %v1239
    %1477 = vmatpush1.msra.mxu0 %v1238
    %1478 = vmatprep.subr.mxu0 %v1243
    %1479 = vmatpush1.msra.mxu0 %v1242
    %1480 = vmatprep.subr.mxu0 %v1247
    %1481 = vmatpush1.msra.mxu0 %v1246
    %1482 = vmatprep.subr.mxu0 %v1251
    %1483 = vmatpush1.msra.mxu0 %v1250
    %1484 = vmatprep.subr.mxu0 %v1255
    %1485 = vmatpush1.msra.mxu0 %v1254
    %1486 = vmatprep.subr.mxu0 %v1259
    %1487 = vmatpush1.msra.mxu0 %v1258
    %1488 = vmatprep.subr.mxu0 %v1263
    %1489 = vmatpush1.msra.mxu0 %v1262
    %1490 = vmatprep.subr.mxu0 %v1267
    %1491 = vmatpush1.msra.mxu0 %v1266
    %1492 = vmatprep.subr.mxu0 %v1271
    %1493 = vmatpush1.msra.mxu0 %v1270
    %1494 = vmatprep.subr.mxu0 %v1275
    %1495 = vmatpush1.msra.mxu0 %v1274
    %1496 = vmatprep.subr.mxu0 %v1279
    %1497 = vmatpush1.msra.mxu0 %v1278
    %1498 = vmatprep.subr.mxu0 %v1283
    %1499 = vmatpush1.msra.mxu0 %v1282
    %1500 = vmatprep.subr.mxu0 %v1287
    %1501 = vmatpush1.msra.mxu0 %v1286
    %1502 = vmatprep.subr.mxu0 %v1291
    %1503 = vmatpush1.msra.mxu0 %v1290
    %1504 = vmatprep.subr.mxu0 %v1295
    %1505 = vmatpush1.msra.mxu0 %v1294
    %1506 = vmatprep.subr.mxu0 %v1299
    %1507 = vmatpush1.msra.mxu0 %v1298
    %1508 = vmatprep.subr.mxu0 0.0
    %1509 = vmatpush1.msra.mxu0 0.0
    %1510 = vmatprep.subr.mxu0 0.0
    %1511 = vmatpush1.msra.mxu0 0.0
    %1512 = vmatprep.subr.mxu0 0.0
    %1513 = vmatpush1.msra.mxu0 0.0
    %1514 = vmatprep.subr.mxu0 0.0
    %1515 = vmatpush1.msra.mxu0 0.0
    %1516 = vmatprep.subr.mxu0 0.0
    %1517 = vmatpush1.msra.mxu0 0.0
    %1518 = vmatprep.subr.mxu0 0.0
    %1519 = vmatpush1.msra.mxu0 0.0
    %1520 = vmatprep.subr.mxu0 0.0
    %1521 = vmatpush1.msra.mxu0 0.0
    %1522 = vmatprep.subr.mxu0 0.0
    %1523 = vmatpush1.msra.mxu0 0.0
    %1524 = vmatprep.subr.mxu0 0.0
    %1525 = vmatpush1.msra.mxu0 0.0
    %1526 = vmatprep.subr.mxu0 0.0
    %1527 = vmatpush1.msra.mxu0 0.0
    %1528 = vmatprep.subr.mxu0 0.0
    %1529 = vmatpush1.msra.mxu0 0.0
    %1530 = vmatprep.subr.mxu0 0.0
    %1531 = vmatpush1.msra.mxu0 0.0
    %1532 = vmatprep.subr.mxu0 0.0
    %1533 = vmatpush1.msra.mxu0 0.0
    %1534 = vmatprep.subr.mxu0 0.0
    %1535 = vmatpush1.msra.mxu0 0.0
    %1536 = vmatprep.subr.mxu0 0.0
    %1537 = vmatpush1.msra.mxu0 0.0
    %1538 = vmatprep.subr.mxu0 0.0
    %1539 = vmatpush1.msra.mxu0 0.0
    %1540 = vmatprep.mubr.f32.mxu0 0.0
    %1541 = vmatmul.mubr.f32.gmra.mrb[0].mxu0 %v1465
    %v1542 = vpop.f32.mrb[0].mxu0
    %v1543 = vadd.f32 0.0, %v1542
    %v1544 = vpop.f32.mrb[0].mxu0
    %v1545 = vadd.f32 0.0, %v1544
    %1546 = vdwg.mxu0
    %1547 = vmatprep.subr.mxu0 %v1241
    %1548 = vmatpush1.msra.mxu0 %v1240
    %1549 = vmatprep.subr.mxu0 %v1245
    %1550 = vmatpush1.msra.mxu0 %v1244
    %1551 = vmatprep.subr.mxu0 %v1249
    %1552 = vmatpush1.msra.mxu0 %v1248
    %1553 = vmatprep.subr.mxu0 %v1253
    %1554 = vmatpush1.msra.mxu0 %v1252
    %1555 = vmatprep.subr.mxu0 %v1257
    %1556 = vmatpush1.msra.mxu0 %v1256
    %1557 = vmatprep.subr.mxu0 %v1261
    %1558 = vmatpush1.msra.mxu0 %v1260
    %1559 = vmatprep.subr.mxu0 %v1265
    %1560 = vmatpush1.msra.mxu0 %v1264
    %1561 = vmatprep.subr.mxu0 %v1269
    %1562 = vmatpush1.msra.mxu0 %v1268
    %1563 = vmatprep.subr.mxu0 %v1273
    %1564 = vmatpush1.msra.mxu0 %v1272
    %1565 = vmatprep.subr.mxu0 %v1277
    %1566 = vmatpush1.msra.mxu0 %v1276
    %1567 = vmatprep.subr.mxu0 %v1281
    %1568 = vmatpush1.msra.mxu0 %v1280
    %1569 = vmatprep.subr.mxu0 %v1285
    %1570 = vmatpush1.msra.mxu0 %v1284
    %1571 = vmatprep.subr.mxu0 %v1289
    %1572 = vmatpush1.msra.mxu0 %v1288
    %1573 = vmatprep.subr.mxu0 %v1293
    %1574 = vmatpush1.msra.mxu0 %v1292
    %1575 = vmatprep.subr.mxu0 %v1297
    %1576 = vmatpush1.msra.mxu0 %v1296
    %1577 = vmatprep.subr.mxu0 %v1301
    %1578 = vmatpush1.msra.mxu0 %v1300
    %1579 = vmatprep.subr.mxu0 0.0
    %1580 = vmatpush1.msra.mxu0 0.0
    %1581 = vmatprep.subr.mxu0 0.0
    %1582 = vmatpush1.msra.mxu0 0.0
    %1583 = vmatprep.subr.mxu0 0.0
    %1584 = vmatpush1.msra.mxu0 0.0
    %1585 = vmatprep.subr.mxu0 0.0
    %1586 = vmatpush1.msra.mxu0 0.0
    %1587 = vmatprep.subr.mxu0 0.0
    %1588 = vmatpush1.msra.mxu0 0.0
    %1589 = vmatprep.subr.mxu0 0.0
    %1590 = vmatpush1.msra.mxu0 0.0
    %1591 = vmatprep.subr.mxu0 0.0
    %1592 = vmatpush1.msra.mxu0 0.0
    %1593 = vmatprep.subr.mxu0 0.0
    %1594 = vmatpush1.msra.mxu0 0.0
    %1595 = vmatprep.subr.mxu0 0.0
    %1596 = vmatpush1.msra.mxu0 0.0
    %1597 = vmatprep.subr.mxu0 0.0
    %1598 = vmatpush1.msra.mxu0 0.0
    %1599 = vmatprep.subr.mxu0 0.0
    %1600 = vmatpush1.msra.mxu0 0.0
    %1601 = vmatprep.subr.mxu0 0.0
    %1602 = vmatpush1.msra.mxu0 0.0
    %1603 = vmatprep.subr.mxu0 0.0
    %1604 = vmatpush1.msra.mxu0 0.0
    %1605 = vmatprep.subr.mxu0 0.0
    %1606 = vmatpush1.msra.mxu0 0.0
    %1607 = vmatprep.subr.mxu0 0.0
    %1608 = vmatpush1.msra.mxu0 0.0
    %1609 = vmatprep.subr.mxu0 0.0
    %1610 = vmatpush1.msra.mxu0 0.0
    %1611 = vmatprep.mubr.f32.mxu0 0.0
    %1612 = vmatmul.mubr.f32.gmra.mrb[0].mxu0 %v1465
    %v1613 = vpop.f32.mrb[0].mxu0
    %v1614 = vadd.f32 0.0, %v1613
    %v1615 = vpop.f32.mrb[0].mxu0
    %v1616 = vadd.f32 0.0, %v1615
    %1617 = vdwg.mxu0
    %v1618 = vadd.f32 %v1472, %v1543
    %v1619 = vadd.f32 %v1473, %v1545
    %v1620 = vadd.f32 %v1474, %v1614
    %v1621 = vadd.f32 %v1475, %v1616
    %v1622 = vmul.f32 %v1618, 0.5
    %v1623 = vtanh.pop %v1622
    %v1624 = vmul.f32 %v1623, 0.5
    %v1625 = vadd.f32 %v1624, 0.5
    %v1626 = vmul.f32 %v1619, 0.5
    %v1627 = vtanh.pop %v1626
    %v1628 = vmul.f32 %v1627, 0.5
    %v1629 = vadd.f32 %v1628, 0.5
    %v1630 = vtanh.pop %v1620
    %v1631 = vmul.f32 %v1621, 0.5
    %v1632 = vtanh.pop %v1631
    %v1633 = vmul.f32 %v1632, 0.5
    %v1634 = vadd.f32 %v1633, 0.5
    %v1635 = vmul.f32 %v1629, %v1463
    %v1636 = vmul.f32 %v1625, %v1630
    %v1637 = vadd.f32 %v1635, %v1636
    %v1638 = vtanh.pop %v1637
    %v1639 = vmul.f32 %v1634, %v1638
  $region53: #{lstm_model_forward.1} parent=0 // loop_footer
    %s1223 = sadd.s32 1, %s1219
  $region54: #{lstm_model_forward.1} parent=0 // loop_footer_branch
    %1218 = sbr.rel target = $region50
  $region55: #{lstm_model_forward.1} parent=0 // loop_exit
    _
  %1640 = vst [vmem:[%s1214] sm:$0xff] %v1224
  %1641 = vst [vmem:[%s1216] sm:$0xff] %v1225
  // Predicated region
  $region56: #{lstm_model_forward.1} parent=0 // pred_check
    %p1642 = pneg %p32
  $region57: #{lstm_model_forward.1} parent=0 // pred_check_branch
    %1644 = sbr.rel (%p1642) target = $region59
  $region58: #{lstm_model_forward.1} parent=0 // pred_region
    %v1645 = vld [vmem:[%s7] sm:$0xff]
    %v1646 = vld [vmem:[%s7 + $0x8] sm:$0xff]
    %v1647 = vld [vmem:[%s7 + $0x10] sm:$0xff]
    %v1648 = vld [vmem:[%s7 + $0x18] sm:$0xff]
    %v1649 = vld [vmem:[%s7 + $0x20] sm:$0xff]
    %v1650 = vld [vmem:[%s7 + $0x28] sm:$0xff]
    %v1651 = vld [vmem:[%s7 + $0x30] sm:$0xff]
    %v1652 = vld [vmem:[%s7 + $0x38] sm:$0xff]
    %v1653 = vld [vmem:[%s7 + $0x40] sm:$0xff]
    %v1654 = vld [vmem:[%s7 + $0x48] sm:$0xff]
    %v1655 = vld [vmem:[%s7 + $0x50] sm:$0xff]
    %v1656 = vld [vmem:[%s7 + $0x58] sm:$0xff]
    %v1657 = vld [vmem:[%s7 + $0x60] sm:$0xff]
    %v1658 = vld [vmem:[%s7 + $0x68] sm:$0xff]
    %v1659 = vld [vmem:[%s7 + $0x70] sm:$0xff]
    %v1660 = vld [vmem:[%s7 + $0x78] sm:$0xff]
    %v1661 = vld [vmem:[%s8] sm:$0x1]
    %v1663 = vlaneseq
    %v1664 = vshrl.u32 %v1663, 7
    %v1665 = vsub.s32 0, %v1664
    %v1666 = vrot.slane %v1661, %v1665
    %1668 = vmatprep.subr.mxu0 0.0
    %1669 = vmatpush1.msra.mxu0 %v1645
    %1670 = vmatprep.subr.mxu0 0.0
    %1671 = vmatpush1.msra.mxu0 %v1646
    %1672 = vmatprep.subr.mxu0 0.0
    %1673 = vmatpush1.msra.mxu0 %v1647
    %1674 = vmatprep.subr.mxu0 0.0
    %1675 = vmatpush1.msra.mxu0 %v1648
    %1676 = vmatprep.subr.mxu0 0.0
    %1677 = vmatpush1.msra.mxu0 %v1649
    %1678 = vmatprep.subr.mxu0 0.0
    %1679 = vmatpush1.msra.mxu0 %v1650
    %1680 = vmatprep.subr.mxu0 0.0
    %1681 = vmatpush1.msra.mxu0 %v1651
    %1682 = vmatprep.subr.mxu0 0.0
    %1683 = vmatpush1.msra.mxu0 %v1652
    %1684 = vmatprep.subr.mxu0 0.0
    %1685 = vmatpush1.msra.mxu0 %v1653
    %1686 = vmatprep.subr.mxu0 0.0
    %1687 = vmatpush1.msra.mxu0 %v1654
    %1688 = vmatprep.subr.mxu0 0.0
    %1689 = vmatpush1.msra.mxu0 %v1655
    %1690 = vmatprep.subr.mxu0 0.0
    %1691 = vmatpush1.msra.mxu0 %v1656
    %1692 = vmatprep.subr.mxu0 0.0
    %1693 = vmatpush1.msra.mxu0 %v1657
    %1694 = vmatprep.subr.mxu0 0.0
    %1695 = vmatpush1.msra.mxu0 %v1658
    %1696 = vmatprep.subr.mxu0 0.0
    %1697 = vmatpush1.msra.mxu0 %v1659
    %1698 = vmatprep.subr.mxu0 0.0
    %1699 = vmatpush1.msra.mxu0 %v1660
    %1700 = vmatprep.subr.mxu0 0.0
    %1701 = vmatpush1.msra.mxu0 0.0
    %1702 = vmatprep.subr.mxu0 0.0
    %1703 = vmatpush1.msra.mxu0 0.0
    %1704 = vmatprep.subr.mxu0 0.0
    %1705 = vmatpush1.msra.mxu0 0.0
    %1706 = vmatprep.subr.mxu0 0.0
    %1707 = vmatpush1.msra.mxu0 0.0
    %1708 = vmatprep.subr.mxu0 0.0
    %1709 = vmatpush1.msra.mxu0 0.0
    %1710 = vmatprep.subr.mxu0 0.0
    %1711 = vmatpush1.msra.mxu0 0.0
    %1712 = vmatprep.subr.mxu0 0.0
    %1713 = vmatpush1.msra.mxu0 0.0
    %1714 = vmatprep.subr.mxu0 0.0
    %1715 = vmatpush1.msra.mxu0 0.0
    %1716 = vmatprep.subr.mxu0 0.0
    %1717 = vmatpush1.msra.mxu0 0.0
    %1718 = vmatprep.subr.mxu0 0.0
    %1719 = vmatpush1.msra.mxu0 0.0
    %1720 = vmatprep.subr.mxu0 0.0
    %1721 = vmatpush1.msra.mxu0 0.0
    %1722 = vmatprep.subr.mxu0 0.0
    %1723 = vmatpush1.msra.mxu0 0.0
    %1724 = vmatprep.subr.mxu0 0.0
    %1725 = vmatpush1.msra.mxu0 0.0
    %1726 = vmatprep.subr.mxu0 0.0
    %1727 = vmatpush1.msra.mxu0 0.0
    %1728 = vmatprep.subr.mxu0 0.0
    %1729 = vmatpush1.msra.mxu0 0.0
    %1730 = vmatprep.subr.mxu0 0.0
    %1731 = vmatpush1.msra.mxu0 0.0
    %1732 = vmatprep.mubr.f32.mxu0 0.0
    %1733 = vmatmul.mubr.f32.gmra.mrb[0].mxu0 %v1224
    %v1734 = vpop.f32.mrb[0].mxu0
    %v1735 = vadd.f32 %v1666, %v1734
    %v1736 = vpop.f32.mrb[0].mxu0
    %1737 = vdwg.mxu0
    %1738 = vst [vmem:[%s9] sm:$0xff] %v1735
  $region59: #{lstm_model_forward.1} parent=0 // pred_fallthru
    _
  // Predicated region
  $region60: #{lstm_model_forward.1} parent=0 // pred_check
    _
  $region61: #{lstm_model_forward.1} parent=0 // pred_check_branch
    %1740 = sbr.rel (0) target = $region63
  $region62: #{lstm_model_forward.1} parent=0 // pred_region
    _
  $region63: #{lstm_model_forward.1} parent=0 // pred_fallthru
    _
  // Predicated region
  $region64: #{lstm_model_forward.1} parent=0 // pred_check
    _
  $region65: #{lstm_model_forward.1} parent=0 // pred_check_branch
    %1742 = sbr.rel (0) target = $region67
  $region66: #{lstm_model_forward.1} parent=0 // pred_region
    _
  $region67: #{lstm_model_forward.1} parent=0 // pred_fallthru
    _

</llo_original>
